<compile_context>
chip_gen: v5e
topology: v5e:2x2
jax: 0.10.0
libtpu: 0.0.40
codegen_flags: <defaults>
</compile_context>

<pallas_src>
import functools

import jax
import jax.numpy as jnp
from jax.experimental import pallas as pl
from jax.experimental.pallas import tpu as pltpu


def _round_up(x, m):
    return ((x + m - 1) // m) * m


def _pick_batch_tile(batch):
    """(8,128)-friendly batch tile.

    - B <= 512: single fat grid step (per-step overhead dominates at these
      shapes; measured roofline fraction rises sharply with tile size).
    - 512 < B <= 2048: ~4 grid steps (>= 2 per TensorCore on v7x) with tiles
      in [128, 512]; never shrink below 128 just to manufacture steps.
    - B > 2048: 512-row tiles.
    """
    b_align = _round_up(max(batch, 1), 8)
    if b_align <= 512:
        return b_align
    if b_align <= 2048:
        return _round_up(pl.cdiv(b_align, 4), 8)
    return 512


def _vmem_limit_bytes(tile, in_dim, hidden_dim, out_pad, param_bytes):
    """Scoped-VMEM budget from actual buffer sizes (+ headroom)."""
    in_bytes = tile * in_dim * 4 * 2            # f32 input tile, double-buffered
    out_bytes = tile * out_pad * 2 * 2          # bf16 output tile, double-buffered
    widest = max(in_dim, hidden_dim, out_pad, 128)
    interm_bytes = tile * widest * 4 * 8        # live f32 LN/matmul temps (generous)
    est = in_bytes + out_bytes + param_bytes + interm_bytes
    return int(min(max(2 * est, 8 * 1024 * 1024), 64 * 1024 * 1024))


def _make_mlp_kernel(num_hidden_layers, eps=1e-5, compute_dtype=jnp.bfloat16):
    """Pallas kernel computing the whole MLP for one batch tile."""

    def kernel(x_ref, *refs):
        # refs = [w0, b0, g0, beta0, ..., w_out, b_out, o_ref]
        o_ref = refs[-1]
        params = refs[:-1]

        # f32 straight from HBM; cast on the VPU (free under MXU slack) instead
        # of an extra wrapper-side XLA pass over the input.
        h = x_ref[...].astype(compute_dtype)    # (TB, in_dim) bf16

        idx = 0
        for _ in range(num_hidden_layers):
            w = params[idx][...]                # (d_in, hidden)  bf16
            b = params[idx + 1][...]            # (1, hidden)     f32
            g = params[idx + 2][...]            # (1, hidden)     f32
            beta = params[idx + 3][...]         # (1, hidden)     f32
            idx += 4

            # Linear on the MXU with f32 accumulation.
            z = jnp.dot(h, w, preferred_element_type=jnp.float32) + b

            # Fused one-pass LayerNorm, stats in f32 (VPU/XLU). Clamp the
            # variance: E[x^2] - mean^2 can go slightly negative in f32.
            inv_n = jnp.float32(1.0 / z.shape[-1])
            s1 = jnp.sum(z, axis=-1, keepdims=True)
            s2 = jnp.sum(z * z, axis=-1, keepdims=True)
            mean = s1 * inv_n
            var = jnp.maximum(s2 * inv_n - mean * mean, 0.0)
            z = (z - mean) * jax.lax.rsqrt(var + eps)
            z = z * g + beta

            # ReLU in f32, cast to bf16 only for the next MXU pass.
            h = jnp.maximum(z, 0.0).astype(compute_dtype)

        w_out = params[idx][...]                # (hidden, out_pad) bf16
        b_out = params[idx + 1][...]            # (1, out_pad)      f32
        y = jnp.dot(h, w_out, preferred_element_type=jnp.float32) + b_out
        # Lane-dense (TB, out_pad) store, bf16 to halve the padded writeback.
        o_ref[...] = y.astype(o_ref.dtype)

    return kernel


def init_dense_decoder_params(key, in_dim, out_dim, hidden_dim, hidden_layers):
    """Deterministic f32 params matching the PyTorch module.

    Linear weights are stored pre-transposed as (in_features, out_features).
    """
    params = []
    d_in = in_dim
    for _ in range(hidden_layers):
        key, kw, kb = jax.random.split(key, 3)
        scale = 1.0 / jnp.sqrt(jnp.float32(d_in))
        w = jax.random.uniform(kw, (d_in, hidden_dim), jnp.float32, -scale, scale)
        b = jax.random.uniform(kb, (1, hidden_dim), jnp.float32, -scale, scale)
        gamma = jnp.ones((1, hidden_dim), jnp.float32)   # LayerNorm weight
        beta = jnp.zeros((1, hidden_dim), jnp.float32)   # LayerNorm bias
        params += [w, b, gamma, beta]
        d_in = hidden_dim
    key, kw, kb = jax.random.split(key, 3)
    scale = 1.0 / jnp.sqrt(jnp.float32(d_in))
    w_out = jax.random.uniform(kw, (d_in, out_dim), jnp.float32, -scale, scale)
    b_out = jax.random.uniform(kb, (1, out_dim), jnp.float32, -scale, scale)
    params += [w_out, b_out]
    return params


def dense_decoder_forward(features, params, *, out_dim, hidden_layers,
                          batch_tile=None, eps=1e-5):
    """features: (B, in_dim) float32 -> (B, out_dim) float32."""
    B, in_dim = features.shape
    compute_dtype = jnp.bfloat16

    tile = _pick_batch_tile(B) if batch_tile is None else batch_tile
    grid = pl.cdiv(B, tile)                       # ragged last block handled by Pallas
    out_pad = _round_up(out_dim, 128)             # lane-dense, unmasked output store

    # --- repack params: bf16 matmul operands, f32 vectors, padded head -------
    kparams = []
    idx = 0
    hidden_dim = in_dim
    for _ in range(hidden_layers):
        w, b, g, beta = params[idx:idx + 4]
        idx += 4
        hidden_dim = w.shape[1]
        kparams += [w.astype(compute_dtype),
                    b.astype(jnp.float32),
                    g.astype(jnp.float32),
                    beta.astype(jnp.float32)]
    w_out, b_out = params[idx], params[idx + 1]
    w_out = jnp.pad(w_out, ((0, 0), (0, out_pad - out_dim))).astype(compute_dtype)
    b_out = jnp.pad(b_out, ((0, 0), (0, out_pad - out_dim))).astype(jnp.float32)
    kparams += [w_out, b_out]

    kernel = _make_mlp_kernel(hidden_layers, eps=eps, compute_dtype=compute_dtype)

    # x / out tiled over the batch; params are constant-index (fetched once),
    # so single-buffer them to save VMEM (no pipelining benefit for them).
    x_spec = pl.BlockSpec((tile, in_dim), lambda i: (i, 0))
    param_specs = [
        pl.BlockSpec(p.shape, lambda i: (0, 0), pipeline_mode=pl.Buffered(1))
        for p in kparams
    ]
    out_spec = pl.BlockSpec((tile, out_pad), lambda i: (i, 0))

    param_bytes = sum(int(p.size) * p.dtype.itemsize for p in kparams)
    vmem_limit = _vmem_limit_bytes(tile, in_dim, hidden_dim, out_pad, param_bytes)

    y = pl.pallas_call(
        kernel,
        out_shape=jax.ShapeDtypeStruct((B, out_pad), compute_dtype),
        grid_spec=pltpu.PrefetchScalarGridSpec(
            num_scalar_prefetch=0,
            grid=(grid,),
            in_specs=[x_spec] + param_specs,
            out_specs=out_spec,
        ),
        compiler_params=pltpu.CompilerParams(
            dimension_semantics=("parallel",),
            vmem_limit_bytes=vmem_limit,
        ),
    )(features, *kparams)

    return y[:, :out_dim].astype(jnp.float32)


def dense_decoder_reference(features, params, *, hidden_layers, eps=1e-5,
                            compute_dtype=jnp.bfloat16):
    """Pure-JAX reference mirroring the kernel's bf16-matmul / f32-LN math."""
    h = features.astype(compute_dtype)
    idx = 0
    for _ in range(hidden_layers):
        w, b, g, beta = params[idx], params[idx + 1], params[idx + 2], params[idx + 3]
        idx += 4
        z = jnp.dot(h, w.astype(compute_dtype),
                    preferred_element_type=jnp.float32) + b
        mean = jnp.mean(z, axis=-1, keepdims=True)
        var = jnp.mean((z - mean) ** 2, axis=-1, keepdims=True)
        z = (z - mean) * jax.lax.rsqrt(var + eps)
        z = z * g + beta
        h = jnp.maximum(z, 0.0).astype(compute_dtype)
    w_out, b_out = params[idx], params[idx + 1]
    return jnp.dot(h, w_out.astype(compute_dtype),
                   preferred_element_type=jnp.float32) + b_out


if __name__ == "__main__":
    # Small, MXU/lane-friendly shapes. B=256 -> a single fat 256-row grid step.
    B = 256           # batch
    IN_DIM = 64       # feature dim fed into the decoder
    HIDDEN_DIM = 128
    HIDDEN_LAYERS = 2
    OUT_DIM = 8       # e.g. 4 waypoints x 2 coords (out_dim // 2 == 4)

    key = jax.random.PRNGKey(0)
    key, kx = jax.random.split(key)
    features = jax.random.normal(kx, (B, IN_DIM), jnp.float32)

    params = init_dense_decoder_params(key, IN_DIM, OUT_DIM, HIDDEN_DIM, HIDDEN_LAYERS)

    fwd = jax.jit(functools.partial(
        dense_decoder_forward, out_dim=OUT_DIM, hidden_layers=HIDDEN_LAYERS))
    y = jax.block_until_ready(fwd(features, params))

    y_ref = dense_decoder_reference(features, params, hidden_layers=HIDDEN_LAYERS)
    assert y.shape == (B, OUT_DIM)
    assert jnp.allclose(y, y_ref, atol=1e-2, rtol=1e-2), "mismatch vs reference"

    # TODO(synk): DenseDecoder.loss (SmoothL1Loss) is training-time only, not part of forward.
    print("KERNEL_OK")
</pallas_src>

<mosaic_0001>
module attributes {stable_mosaic.version = 11 : i64} {
  func.func @kernel(%arg0: i32, %arg1: memref<256x64xf32, #tpu.memory_space<vmem>>, %arg2: memref<64x128xbf16, #tpu.memory_space<vmem>>, %arg3: memref<1x128xf32, #tpu.memory_space<vmem>>, %arg4: memref<1x128xf32, #tpu.memory_space<vmem>>, %arg5: memref<1x128xf32, #tpu.memory_space<vmem>>, %arg6: memref<128x128xbf16, #tpu.memory_space<vmem>>, %arg7: memref<1x128xf32, #tpu.memory_space<vmem>>, %arg8: memref<1x128xf32, #tpu.memory_space<vmem>>, %arg9: memref<1x128xf32, #tpu.memory_space<vmem>>, %arg10: memref<128x128xbf16, #tpu.memory_space<vmem>>, %arg11: memref<1x128xf32, #tpu.memory_space<vmem>>, %arg12: memref<256x128xbf16, #tpu.memory_space<vmem>>) attributes {dimension_semantics = [#tpu.dimension_semantics<parallel>], iteration_bounds = array<i64: 1>, scalar_prefetch = 0 : i64, scratch_operands = 0 : i64, tpu.core_type = #tpu.core_type<tc>, window_params = [{transform_indices = @transform_0, window_bounds = array<i64: 256, 64>}, {pipeline_mode = #tpu.pipeline_mode<synchronous>, transform_indices = @transform_1, window_bounds = array<i64: 64, 128>}, {pipeline_mode = #tpu.pipeline_mode<synchronous>, transform_indices = @transform_2, window_bounds = array<i64: 1, 128>}, {pipeline_mode = #tpu.pipeline_mode<synchronous>, transform_indices = @transform_3, window_bounds = array<i64: 1, 128>}, {pipeline_mode = #tpu.pipeline_mode<synchronous>, transform_indices = @transform_4, window_bounds = array<i64: 1, 128>}, {pipeline_mode = #tpu.pipeline_mode<synchronous>, transform_indices = @transform_5, window_bounds = array<i64: 128, 128>}, {pipeline_mode = #tpu.pipeline_mode<synchronous>, transform_indices = @transform_6, window_bounds = array<i64: 1, 128>}, {pipeline_mode = #tpu.pipeline_mode<synchronous>, transform_indices = @transform_7, window_bounds = array<i64: 1, 128>}, {pipeline_mode = #tpu.pipeline_mode<synchronous>, transform_indices = @transform_8, window_bounds = array<i64: 1, 128>}, {pipeline_mode = #tpu.pipeline_mode<synchronous>, transform_indices = @transform_9, window_bounds = array<i64: 128, 128>}, {pipeline_mode = #tpu.pipeline_mode<synchronous>, transform_indices = @transform_10, window_bounds = array<i64: 1, 128>}, {transform_indices = @transform_11, window_bounds = array<i64: 256, 128>}]} {
    %c0 = arith.constant 0 : index
    %c0_0 = arith.constant 0 : index
    %0 = vector.load %arg1[%c0, %c0_0] : memref<256x64xf32, #tpu.memory_space<vmem>>, vector<256x64xf32>
    %1 = arith.truncf %0 : vector<256x64xf32> to vector<256x64xbf16>
    %c0_1 = arith.constant 0 : index
    %c0_2 = arith.constant 0 : index
    %2 = vector.load %arg2[%c0_1, %c0_2] : memref<64x128xbf16, #tpu.memory_space<vmem>>, vector<64x128xbf16>
    %c0_3 = arith.constant 0 : index
    %c0_4 = arith.constant 0 : index
    %3 = vector.load %arg3[%c0_3, %c0_4] : memref<1x128xf32, #tpu.memory_space<vmem>>, vector<1x128xf32>
    %c0_5 = arith.constant 0 : index
    %c0_6 = arith.constant 0 : index
    %4 = vector.load %arg4[%c0_5, %c0_6] : memref<1x128xf32, #tpu.memory_space<vmem>>, vector<1x128xf32>
    %c0_7 = arith.constant 0 : index
    %c0_8 = arith.constant 0 : index
    %5 = vector.load %arg5[%c0_7, %c0_8] : memref<1x128xf32, #tpu.memory_space<vmem>>, vector<1x128xf32>
    %cst = arith.constant dense<0.000000e+00> : vector<256x128xf32>
    %6 = tpu.matmul %1, %2, %cst {dimension_numbers = #tpu.dot_dimension_numbers<[1], [0], [0], [1], [0, 0, 1, 1], [], []>} : vector<256x64xbf16>, vector<64x128xbf16>, vector<256x128xf32> -> vector<256x128xf32>
    %7 = vector.broadcast %3 : vector<1x128xf32> to vector<256x128xf32>
    %8 = arith.addf %6, %7 : vector<256x128xf32>
    %cst_9 = arith.constant dense<0.000000e+00> : vector<256xf32>
    %9 = vector.multi_reduction <add>, %8, %cst_9 [1] : vector<256x128xf32> to vector<256xf32>
    %10 = vector.shape_cast %9 : vector<256xf32> to vector<256x1xf32>
    %11 = arith.mulf %8, %8 : vector<256x128xf32>
    %cst_10 = arith.constant dense<0.000000e+00> : vector<256xf32>
    %12 = vector.multi_reduction <add>, %11, %cst_10 [1] : vector<256x128xf32> to vector<256xf32>
    %13 = vector.shape_cast %12 : vector<256xf32> to vector<256x1xf32>
    %cst_11 = arith.constant 7.812500e-03 : f32
    %14 = vector.broadcast %cst_11 : f32 to vector<256x1xf32>
    %15 = arith.mulf %10, %14 : vector<256x1xf32>
    %cst_12 = arith.constant 7.812500e-03 : f32
    %16 = vector.broadcast %cst_12 : f32 to vector<256x1xf32>
    %17 = arith.mulf %13, %16 : vector<256x1xf32>
    %18 = arith.mulf %15, %15 : vector<256x1xf32>
    %19 = arith.subf %17, %18 : vector<256x1xf32>
    %cst_13 = arith.constant 0.000000e+00 : f32
    %20 = vector.broadcast %cst_13 : f32 to vector<256x1xf32>
    %21 = arith.maximumf %19, %20 : vector<256x1xf32>
    %22 = vector.broadcast %15 : vector<256x1xf32> to vector<256x128xf32>
    %23 = arith.subf %8, %22 : vector<256x128xf32>
    %cst_14 = arith.constant 9.99999974E-6 : f32
    %24 = vector.broadcast %cst_14 : f32 to vector<256x1xf32>
    %25 = arith.addf %21, %24 : vector<256x1xf32>
    %26 = math.rsqrt %25 : vector<256x1xf32>
    %27 = vector.broadcast %26 : vector<256x1xf32> to vector<256x128xf32>
    %28 = arith.mulf %23, %27 : vector<256x128xf32>
    %29 = vector.broadcast %4 : vector<1x128xf32> to vector<256x128xf32>
    %30 = arith.mulf %28, %29 : vector<256x128xf32>
    %31 = vector.broadcast %5 : vector<1x128xf32> to vector<256x128xf32>
    %32 = arith.addf %30, %31 : vector<256x128xf32>
    %cst_15 = arith.constant 0.000000e+00 : f32
    %33 = vector.broadcast %cst_15 : f32 to vector<256x128xf32>
    %34 = arith.maximumf %32, %33 : vector<256x128xf32>
    %35 = arith.truncf %34 : vector<256x128xf32> to vector<256x128xbf16>
    %c0_16 = arith.constant 0 : index
    %c0_17 = arith.constant 0 : index
    %36 = vector.load %arg6[%c0_16, %c0_17] : memref<128x128xbf16, #tpu.memory_space<vmem>>, vector<128x128xbf16>
    %c0_18 = arith.constant 0 : index
    %c0_19 = arith.constant 0 : index
    %37 = vector.load %arg7[%c0_18, %c0_19] : memref<1x128xf32, #tpu.memory_space<vmem>>, vector<1x128xf32>
    %c0_20 = arith.constant 0 : index
    %c0_21 = arith.constant 0 : index
    %38 = vector.load %arg8[%c0_20, %c0_21] : memref<1x128xf32, #tpu.memory_space<vmem>>, vector<1x128xf32>
    %c0_22 = arith.constant 0 : index
    %c0_23 = arith.constant 0 : index
    %39 = vector.load %arg9[%c0_22, %c0_23] : memref<1x128xf32, #tpu.memory_space<vmem>>, vector<1x128xf32>
    %cst_24 = arith.constant dense<0.000000e+00> : vector<256x128xf32>
    %40 = tpu.matmul %35, %36, %cst_24 {dimension_numbers = #tpu.dot_dimension_numbers<[1], [0], [0], [1], [0, 0, 1, 1], [], []>} : vector<256x128xbf16>, vector<128x128xbf16>, vector<256x128xf32> -> vector<256x128xf32>
    %41 = vector.broadcast %37 : vector<1x128xf32> to vector<256x128xf32>
    %42 = arith.addf %40, %41 : vector<256x128xf32>
    %cst_25 = arith.constant dense<0.000000e+00> : vector<256xf32>
    %43 = vector.multi_reduction <add>, %42, %cst_25 [1] : vector<256x128xf32> to vector<256xf32>
    %44 = vector.shape_cast %43 : vector<256xf32> to vector<256x1xf32>
    %45 = arith.mulf %42, %42 : vector<256x128xf32>
    %cst_26 = arith.constant dense<0.000000e+00> : vector<256xf32>
    %46 = vector.multi_reduction <add>, %45, %cst_26 [1] : vector<256x128xf32> to vector<256xf32>
    %47 = vector.shape_cast %46 : vector<256xf32> to vector<256x1xf32>
    %cst_27 = arith.constant 7.812500e-03 : f32
    %48 = vector.broadcast %cst_27 : f32 to vector<256x1xf32>
    %49 = arith.mulf %44, %48 : vector<256x1xf32>
    %cst_28 = arith.constant 7.812500e-03 : f32
    %50 = vector.broadcast %cst_28 : f32 to vector<256x1xf32>
    %51 = arith.mulf %47, %50 : vector<256x1xf32>
    %52 = arith.mulf %49, %49 : vector<256x1xf32>
    %53 = arith.subf %51, %52 : vector<256x1xf32>
    %cst_29 = arith.constant 0.000000e+00 : f32
    %54 = vector.broadcast %cst_29 : f32 to vector<256x1xf32>
    %55 = arith.maximumf %53, %54 : vector<256x1xf32>
    %56 = vector.broadcast %49 : vector<256x1xf32> to vector<256x128xf32>
    %57 = arith.subf %42, %56 : vector<256x128xf32>
    %cst_30 = arith.constant 9.99999974E-6 : f32
    %58 = vector.broadcast %cst_30 : f32 to vector<256x1xf32>
    %59 = arith.addf %55, %58 : vector<256x1xf32>
    %60 = math.rsqrt %59 : vector<256x1xf32>
    %61 = vector.broadcast %60 : vector<256x1xf32> to vector<256x128xf32>
    %62 = arith.mulf %57, %61 : vector<256x128xf32>
    %63 = vector.broadcast %38 : vector<1x128xf32> to vector<256x128xf32>
    %64 = arith.mulf %62, %63 : vector<256x128xf32>
    %65 = vector.broadcast %39 : vector<1x128xf32> to vector<256x128xf32>
    %66 = arith.addf %64, %65 : vector<256x128xf32>
    %cst_31 = arith.constant 0.000000e+00 : f32
    %67 = vector.broadcast %cst_31 : f32 to vector<256x128xf32>
    %68 = arith.maximumf %66, %67 : vector<256x128xf32>
    %69 = arith.truncf %68 : vector<256x128xf32> to vector<256x128xbf16>
    %c0_32 = arith.constant 0 : index
    %c0_33 = arith.constant 0 : index
    %70 = vector.load %arg10[%c0_32, %c0_33] : memref<128x128xbf16, #tpu.memory_space<vmem>>, vector<128x128xbf16>
    %c0_34 = arith.constant 0 : index
    %c0_35 = arith.constant 0 : index
    %71 = vector.load %arg11[%c0_34, %c0_35] : memref<1x128xf32, #tpu.memory_space<vmem>>, vector<1x128xf32>
    %cst_36 = arith.constant dense<0.000000e+00> : vector<256x128xf32>
    %72 = tpu.matmul %69, %70, %cst_36 {dimension_numbers = #tpu.dot_dimension_numbers<[1], [0], [0], [1], [0, 0, 1, 1], [], []>} : vector<256x128xbf16>, vector<128x128xbf16>, vector<256x128xf32> -> vector<256x128xf32>
    %73 = vector.broadcast %71 : vector<1x128xf32> to vector<256x128xf32>
    %74 = arith.addf %72, %73 : vector<256x128xf32>
    %75 = arith.truncf %74 : vector<256x128xf32> to vector<256x128xbf16>
    %c0_37 = arith.constant 0 : index
    %c0_38 = arith.constant 0 : index
    %76 = vector.load %arg12[%c0_37, %c0_38] : memref<256x128xbf16, #tpu.memory_space<vmem>>, vector<256x128xbf16>
    tpu.vector_store %arg12[%c0_37, %c0_38], %75 {strides = array<i32>} : memref<256x128xbf16, #tpu.memory_space<vmem>>, vector<256x128xbf16>,
    return
  }
  func.func @transform_0(%arg0: i32) -> (i32, i32) {
    %c0_i32 = arith.constant 0 : i32
    %c0_i32_0 = arith.constant 0 : i32
    return %arg0, %c0_i32 : i32, i32
  }
  func.func @transform_1(%arg0: i32) -> (i32, i32) {
    %c0_i32 = arith.constant 0 : i32
    %c0_i32_0 = arith.constant 0 : i32
    %c0_i32_1 = arith.constant 0 : i32
    return %c0_i32, %c0_i32_0 : i32, i32
  }
  func.func @transform_2(%arg0: i32) -> (i32, i32) {
    %c0_i32 = arith.constant 0 : i32
    %c0_i32_0 = arith.constant 0 : i32
    %c0_i32_1 = arith.constant 0 : i32
    return %c0_i32, %c0_i32_0 : i32, i32
  }
  func.func @transform_3(%arg0: i32) -> (i32, i32) {
    %c0_i32 = arith.constant 0 : i32
    %c0_i32_0 = arith.constant 0 : i32
    %c0_i32_1 = arith.constant 0 : i32
    return %c0_i32, %c0_i32_0 : i32, i32
  }
  func.func @transform_4(%arg0: i32) -> (i32, i32) {
    %c0_i32 = arith.constant 0 : i32
    %c0_i32_0 = arith.constant 0 : i32
    %c0_i32_1 = arith.constant 0 : i32
    return %c0_i32, %c0_i32_0 : i32, i32
  }
  func.func @transform_5(%arg0: i32) -> (i32, i32) {
    %c0_i32 = arith.constant 0 : i32
    %c0_i32_0 = arith.constant 0 : i32
    %c0_i32_1 = arith.constant 0 : i32
    return %c0_i32, %c0_i32_0 : i32, i32
  }
  func.func @transform_6(%arg0: i32) -> (i32, i32) {
    %c0_i32 = arith.constant 0 : i32
    %c0_i32_0 = arith.constant 0 : i32
    %c0_i32_1 = arith.constant 0 : i32
    return %c0_i32, %c0_i32_0 : i32, i32
  }
  func.func @transform_7(%arg0: i32) -> (i32, i32) {
    %c0_i32 = arith.constant 0 : i32
    %c0_i32_0 = arith.constant 0 : i32
    %c0_i32_1 = arith.constant 0 : i32
    return %c0_i32, %c0_i32_0 : i32, i32
  }
  func.func @transform_8(%arg0: i32) -> (i32, i32) {
    %c0_i32 = arith.constant 0 : i32
    %c0_i32_0 = arith.constant 0 : i32
    %c0_i32_1 = arith.constant 0 : i32
    return %c0_i32, %c0_i32_0 : i32, i32
  }
  func.func @transform_9(%arg0: i32) -> (i32, i32) {
    %c0_i32 = arith.constant 0 : i32
    %c0_i32_0 = arith.constant 0 : i32
    %c0_i32_1 = arith.constant 0 : i32
    return %c0_i32, %c0_i32_0 : i32, i32
  }
  func.func @transform_10(%arg0: i32) -> (i32, i32) {
    %c0_i32 = arith.constant 0 : i32
    %c0_i32_0 = arith.constant 0 : i32
    %c0_i32_1 = arith.constant 0 : i32
    return %c0_i32, %c0_i32_0 : i32, i32
  }
  func.func @transform_11(%arg0: i32) -> (i32, i32) {
    %c0_i32 = arith.constant 0 : i32
    %c0_i32_0 = arith.constant 0 : i32
    return %arg0, %c0_i32 : i32, i32
  }
}

</mosaic_0001>

<llo_original>
// kernel: dense_decoder_forward.1
$region0: #{dense_decoder_forward.1}
  #allocation0 [shape = 'u32[]', space=smem, size = 0x4, offset = 0x4, fixed_abs, tag = 'smem constant byte address 0x4 - core index']
  #allocation1 [shape = 'u32[72,128]{1,0:T(1,128)}', space=vmem, size = 0x9000, scoped, tag = 'internal scratch']
  %s0 = inlined_call_operand.vmem [shape: f32[256,64], index: 0, kind: input, shape index: {}]
  %s1 = inlined_call_operand.vmem [shape: bf16[64,128], index: 1, kind: input, shape index: {}]
  %s2 = inlined_call_operand.vmem [shape: f32[1,128], index: 2, kind: input, shape index: {}]
  %s3 = inlined_call_operand.vmem [shape: f32[1,128], index: 3, kind: input, shape index: {}]
  %s4 = inlined_call_operand.vmem [shape: f32[1,128], index: 4, kind: input, shape index: {}]
  %s5 = inlined_call_operand.vmem [shape: bf16[128,128], index: 5, kind: input, shape index: {}]
  %s6 = inlined_call_operand.vmem [shape: f32[1,128], index: 6, kind: input, shape index: {}]
  %s7 = inlined_call_operand.vmem [shape: f32[1,128], index: 7, kind: input, shape index: {}]
  %s8 = inlined_call_operand.vmem [shape: f32[1,128], index: 8, kind: input, shape index: {}]
  %s9 = inlined_call_operand.vmem [shape: bf16[128,128], index: 9, kind: input, shape index: {}]
  %s10 = inlined_call_operand.vmem [shape: f32[1,128], index: 10, kind: input, shape index: {}]
  %s11 = inlined_call_operand.vmem [shape: bf16[256,128], index: 11, kind: output, shape index: {}]
  %s12 = sld [smem:[#allocation0]]
  $region54: #{dense_decoder_forward.1} parent=0
    _
  %s14 = ssub.s32 1, %s12
  %s15 = scalar_select 0, %s14, %s12
  // Predicated region
  $region2: #{dense_decoder_forward.1} parent=0 // pred_check
    _
  $region3: #{dense_decoder_forward.1} parent=0 // pred_check_branch
    %17 = sbr.rel (0) target = $region5
  $region4: #{dense_decoder_forward.1} parent=0 // pred_region
    _
  $region5: #{dense_decoder_forward.1} parent=0 // pred_fallthru
    _
  // Predicated region
  $region6: #{dense_decoder_forward.1} parent=0 // pred_check
    _
  $region7: #{dense_decoder_forward.1} parent=0 // pred_check_branch
    %19 = sbr.rel (0) target = $region9
  $region8: #{dense_decoder_forward.1} parent=0 // pred_region
    _
  $region9: #{dense_decoder_forward.1} parent=0 // pred_fallthru
    _
  // Predicated region
  $region10: #{dense_decoder_forward.1} parent=0 // pred_check
    _
  $region11: #{dense_decoder_forward.1} parent=0 // pred_check_branch
    %21 = sbr.rel (0) target = $region13
  $region12: #{dense_decoder_forward.1} parent=0 // pred_region
    _
  $region13: #{dense_decoder_forward.1} parent=0 // pred_fallthru
    _
  // Predicated region
  $region14: #{dense_decoder_forward.1} parent=0 // pred_check
    _
  $region15: #{dense_decoder_forward.1} parent=0 // pred_check_branch
    %23 = sbr.rel (0) target = $region17
  $region16: #{dense_decoder_forward.1} parent=0 // pred_region
    _
  $region17: #{dense_decoder_forward.1} parent=0 // pred_fallthru
    _
  // Predicated region
  $region18: #{dense_decoder_forward.1} parent=0 // pred_check
    _
  $region19: #{dense_decoder_forward.1} parent=0 // pred_check_branch
    %25 = sbr.rel (0) target = $region21
  $region20: #{dense_decoder_forward.1} parent=0 // pred_region
    _
  $region21: #{dense_decoder_forward.1} parent=0 // pred_fallthru
    _
  // Predicated region
  $region22: #{dense_decoder_forward.1} parent=0 // pred_check
    _
  $region23: #{dense_decoder_forward.1} parent=0 // pred_check_branch
    %27 = sbr.rel (0) target = $region25
  $region24: #{dense_decoder_forward.1} parent=0 // pred_region
    _
  $region25: #{dense_decoder_forward.1} parent=0 // pred_fallthru
    _
  // Predicated region
  $region26: #{dense_decoder_forward.1} parent=0 // pred_check
    _
  $region27: #{dense_decoder_forward.1} parent=0 // pred_check_branch
    %29 = sbr.rel (0) target = $region29
  $region28: #{dense_decoder_forward.1} parent=0 // pred_region
    _
  $region29: #{dense_decoder_forward.1} parent=0 // pred_fallthru
    _
  // Predicated region
  $region30: #{dense_decoder_forward.1} parent=0 // pred_check
    _
  $region31: #{dense_decoder_forward.1} parent=0 // pred_check_branch
    %31 = sbr.rel (0) target = $region33
  $region32: #{dense_decoder_forward.1} parent=0 // pred_region
    _
  $region33: #{dense_decoder_forward.1} parent=0 // pred_fallthru
    _
  // Predicated region
  $region34: #{dense_decoder_forward.1} parent=0 // pred_check
    _
  $region35: #{dense_decoder_forward.1} parent=0 // pred_check_branch
    %33 = sbr.rel (0) target = $region37
  $region36: #{dense_decoder_forward.1} parent=0 // pred_region
    _
  $region37: #{dense_decoder_forward.1} parent=0 // pred_fallthru
    _
  // Predicated region
  $region38: #{dense_decoder_forward.1} parent=0 // pred_check
    _
  $region39: #{dense_decoder_forward.1} parent=0 // pred_check_branch
    %35 = sbr.rel (0) target = $region41
  $region40: #{dense_decoder_forward.1} parent=0 // pred_region
    _
  $region41: #{dense_decoder_forward.1} parent=0 // pred_fallthru
    _
  // Predicated region
  $region42: #{dense_decoder_forward.1} parent=0 // pred_check
    _
  $region43: #{dense_decoder_forward.1} parent=0 // pred_check_branch
    %37 = sbr.rel (0) target = $region45
  $region44: #{dense_decoder_forward.1} parent=0 // pred_region
    _
  $region45: #{dense_decoder_forward.1} parent=0 // pred_fallthru
    _
  %v39 = vld [vmem:[%s0] sm:$0xff]
  %v40 = vld [vmem:[%s0 + $0x8] sm:$0xff]
  %v41 = vld [vmem:[%s0 + $0x10] sm:$0xff]
  %v42 = vld [vmem:[%s0 + $0x18] sm:$0xff]
  %v43 = vld [vmem:[%s0 + $0x20] sm:$0xff]
  %v44 = vld [vmem:[%s0 + $0x28] sm:$0xff]
  %v45 = vld [vmem:[%s0 + $0x30] sm:$0xff]
  %v46 = vld [vmem:[%s0 + $0x38] sm:$0xff]
  %v47 = vld [vmem:[%s0 + $0x40] sm:$0xff]
  %v48 = vld [vmem:[%s0 + $0x48] sm:$0xff]
  %v49 = vld [vmem:[%s0 + $0x50] sm:$0xff]
  %v50 = vld [vmem:[%s0 + $0x58] sm:$0xff]
  %v51 = vld [vmem:[%s0 + $0x60] sm:$0xff]
  %v52 = vld [vmem:[%s0 + $0x68] sm:$0xff]
  %v53 = vld [vmem:[%s0 + $0x70] sm:$0xff]
  %v54 = vld [vmem:[%s0 + $0x78] sm:$0xff]
  %v55 = vld [vmem:[%s0 + $0x80] sm:$0xff]
  %v56 = vld [vmem:[%s0 + $0x88] sm:$0xff]
  %v57 = vld [vmem:[%s0 + $0x90] sm:$0xff]
  %v58 = vld [vmem:[%s0 + $0x98] sm:$0xff]
  %v59 = vld [vmem:[%s0 + $0xa0] sm:$0xff]
  %v60 = vld [vmem:[%s0 + $0xa8] sm:$0xff]
  %v61 = vld [vmem:[%s0 + $0xb0] sm:$0xff]
  %v62 = vld [vmem:[%s0 + $0xb8] sm:$0xff]
  %v63 = vld [vmem:[%s0 + $0xc0] sm:$0xff]
  %v64 = vld [vmem:[%s0 + $0xc8] sm:$0xff]
  %v65 = vld [vmem:[%s0 + $0xd0] sm:$0xff]
  %v66 = vld [vmem:[%s0 + $0xd8] sm:$0xff]
  %v67 = vld [vmem:[%s0 + $0xe0] sm:$0xff]
  %v68 = vld [vmem:[%s0 + $0xe8] sm:$0xff]
  %v69 = vld [vmem:[%s0 + $0xf0] sm:$0xff]
  %v70 = vld [vmem:[%s0 + $0xf8] sm:$0xff]
  %v71 = vpack.c.bf16 %v40, %v39
  %v72 = vpack.c.bf16 %v42, %v41
  %v73 = vpack.c.bf16 %v44, %v43
  %v74 = vpack.c.bf16 %v46, %v45
  %v75 = vpack.c.bf16 %v48, %v47
  %v76 = vpack.c.bf16 %v50, %v49
  %v77 = vpack.c.bf16 %v52, %v51
  %v78 = vpack.c.bf16 %v54, %v53
  %v79 = vpack.c.bf16 %v56, %v55
  %v80 = vpack.c.bf16 %v58, %v57
  %v81 = vpack.c.bf16 %v60, %v59
  %v82 = vpack.c.bf16 %v62, %v61
  %v83 = vpack.c.bf16 %v64, %v63
  %v84 = vpack.c.bf16 %v66, %v65
  %v85 = vpack.c.bf16 %v68, %v67
  %v86 = vpack.c.bf16 %v70, %v69
  %v87 = vld [vmem:[%s1] sm:$0xf]
  %v88 = vld [vmem:[%s1 + $0x4] sm:$0xf]
  %v89 = vld [vmem:[%s1 + $0x8] sm:$0xf]
  %v90 = vld [vmem:[%s1 + $0xc] sm:$0xf]
  %v91 = vld [vmem:[%s1 + $0x10] sm:$0xf]
  %v92 = vld [vmem:[%s1 + $0x14] sm:$0xf]
  %v93 = vld [vmem:[%s1 + $0x18] sm:$0xf]
  %v94 = vld [vmem:[%s1 + $0x1c] sm:$0xf]
  %v95 = vld [vmem:[%s2] sm:$0x1]
  %v96 = vld [vmem:[%s3] sm:$0x1]
  %v97 = vld [vmem:[%s4] sm:$0x1]
  %v99 = vperm.slane %v95, 0
  %v109 = vunpack.c.l.b16 %v87
  %v110 = vunpack.c.l.b16 %v88
  %v111 = vunpack.c.l.b16 %v89
  %v112 = vunpack.c.l.b16 %v90
  %v113 = vunpack.c.l.b16 %v91
  %v114 = vunpack.c.l.b16 %v92
  %v115 = vunpack.c.l.b16 %v93
  %v116 = vunpack.c.l.b16 %v94
  %v117 = vpack.c.b16 %v110, %v109
  %v118 = vpack.c.b16 %v112, %v111
  %v119 = vpack.c.b16 %v114, %v113
  %v120 = vpack.c.b16 %v116, %v115
  %vm125 = vcmask 523264
  %v127 = vsel %vm125, %v71, 0
  %v130 = vsel %vm125, %v72, 0
  %v133 = vsel %vm125, %v73, 0
  %v136 = vsel %vm125, %v74, 0
  %v139 = vsel %vm125, %v75, 0
  %v142 = vsel %vm125, %v76, 0
  %v145 = vsel %vm125, %v77, 0
  %v148 = vsel %vm125, %v78, 0
  %v151 = vsel %vm125, %v79, 0
  %v154 = vsel %vm125, %v80, 0
  %v157 = vsel %vm125, %v81, 0
  %v160 = vsel %vm125, %v82, 0
  %v163 = vsel %vm125, %v83, 0
  %v166 = vsel %vm125, %v84, 0
  %v169 = vsel %vm125, %v85, 0
  %v172 = vsel %vm125, %v86, 0
  %174 = vmatpush.bf16.msra.mxu0 0
  %175 = vmatpush.bf16.msra.mxu0 0
  %176 = vmatpush.bf16.msra.mxu0 0
  %177 = vmatpush.bf16.msra.mxu0 0
  %178 = vmatpush.bf16.msra.mxu0 %v120
  %179 = vmatpush.bf16.msra.mxu0 %v119
  %180 = vmatpush.bf16.msra.mxu0 %v118
  %181 = vmatpush.bf16.msra.mxu0 %v117
  %182 = vmatmul.bf16.gmra.mxu0 %v127
  %v183 = vpop.f32.mrf.mxu0
  %v184 = vadd.f32 %v99, %v183
  %v185 = vpop.f32.mrf.mxu0
  %v186 = vadd.f32 %v99, %v185
  %187 = vmatmul.bf16.gmra.mxu0 %v130
  %v188 = vpop.f32.mrf.mxu0
  %v189 = vadd.f32 %v99, %v188
  %v190 = vpop.f32.mrf.mxu0
  %v191 = vadd.f32 %v99, %v190
  %192 = vmatmul.bf16.gmra.mxu0 %v133
  %v193 = vpop.f32.mrf.mxu0
  %v194 = vadd.f32 %v99, %v193
  %v195 = vpop.f32.mrf.mxu0
  %v196 = vadd.f32 %v99, %v195
  %197 = vmatmul.bf16.gmra.mxu0 %v136
  %v198 = vpop.f32.mrf.mxu0
  %v199 = vadd.f32 %v99, %v198
  %v200 = vpop.f32.mrf.mxu0
  %v201 = vadd.f32 %v99, %v200
  %202 = vmatmul.bf16.gmra.mxu0 %v139
  %v203 = vpop.f32.mrf.mxu0
  %v204 = vadd.f32 %v99, %v203
  %v205 = vpop.f32.mrf.mxu0
  %v206 = vadd.f32 %v99, %v205
  %207 = vmatmul.bf16.gmra.mxu0 %v142
  %v208 = vpop.f32.mrf.mxu0
  %v209 = vadd.f32 %v99, %v208
  %v210 = vpop.f32.mrf.mxu0
  %v211 = vadd.f32 %v99, %v210
  %212 = vmatmul.bf16.gmra.mxu0 %v145
  %v213 = vpop.f32.mrf.mxu0
  %v214 = vadd.f32 %v99, %v213
  %v215 = vpop.f32.mrf.mxu0
  %v216 = vadd.f32 %v99, %v215
  %217 = vmatmul.bf16.gmra.mxu0 %v148
  %v218 = vpop.f32.mrf.mxu0
  %v219 = vadd.f32 %v99, %v218
  %v220 = vpop.f32.mrf.mxu0
  %v221 = vadd.f32 %v99, %v220
  %222 = vmatmul.bf16.gmra.mxu0 %v151
  %v223 = vpop.f32.mrf.mxu0
  %v224 = vadd.f32 %v99, %v223
  %v225 = vpop.f32.mrf.mxu0
  %v226 = vadd.f32 %v99, %v225
  %227 = vmatmul.bf16.gmra.mxu0 %v154
  %v228 = vpop.f32.mrf.mxu0
  %v229 = vadd.f32 %v99, %v228
  %v230 = vpop.f32.mrf.mxu0
  %v231 = vadd.f32 %v99, %v230
  %232 = vmatmul.bf16.gmra.mxu0 %v157
  %v233 = vpop.f32.mrf.mxu0
  %v234 = vadd.f32 %v99, %v233
  %v235 = vpop.f32.mrf.mxu0
  %v236 = vadd.f32 %v99, %v235
  %237 = vmatmul.bf16.gmra.mxu0 %v160
  %v238 = vpop.f32.mrf.mxu0
  %v239 = vadd.f32 %v99, %v238
  %v240 = vpop.f32.mrf.mxu0
  %v241 = vadd.f32 %v99, %v240
  %242 = vmatmul.bf16.gmra.mxu0 %v163
  %v243 = vpop.f32.mrf.mxu0
  %v244 = vadd.f32 %v99, %v243
  %v245 = vpop.f32.mrf.mxu0
  %v246 = vadd.f32 %v99, %v245
  %247 = vmatmul.bf16.gmra.mxu0 %v166
  %v248 = vpop.f32.mrf.mxu0
  %v249 = vadd.f32 %v99, %v248
  %v250 = vpop.f32.mrf.mxu0
  %v251 = vadd.f32 %v99, %v250
  %252 = vmatmul.bf16.gmra.mxu0 %v169
  %v253 = vpop.f32.mrf.mxu0
  %v254 = vadd.f32 %v99, %v253
  %v255 = vpop.f32.mrf.mxu0
  %v256 = vadd.f32 %v99, %v255
  %257 = vmatmul.bf16.gmra.mxu0 %v172
  %v258 = vpop.f32.mrf.mxu0
  %v259 = vadd.f32 %v99, %v258
  %v260 = vpop.f32.mrf.mxu0
  %v261 = vadd.f32 %v99, %v260
  %262 = vdwg.mxu0
  %263 = vadd.xlane.f32.xlu0 %v184
  %v264 = vpop.xlane.xlu0 %263
  %265 = vadd.xlane.f32.xlu0 %v186
  %v266 = vpop.xlane.xlu0 %265
  %267 = vadd.xlane.f32.xlu0 %v189
  %v268 = vpop.xlane.xlu0 %267
  %269 = vadd.xlane.f32.xlu0 %v191
  %v270 = vpop.xlane.xlu0 %269
  %271 = vadd.xlane.f32.xlu0 %v194
  %v272 = vpop.xlane.xlu0 %271
  %273 = vadd.xlane.f32.xlu0 %v196
  %v274 = vpop.xlane.xlu0 %273
  %275 = vadd.xlane.f32.xlu0 %v199
  %v276 = vpop.xlane.xlu0 %275
  %277 = vadd.xlane.f32.xlu0 %v201
  %v278 = vpop.xlane.xlu0 %277
  %279 = vadd.xlane.f32.xlu0 %v204
  %v280 = vpop.xlane.xlu0 %279
  %281 = vadd.xlane.f32.xlu0 %v206
  %v282 = vpop.xlane.xlu0 %281
  %283 = vadd.xlane.f32.xlu0 %v209
  %v284 = vpop.xlane.xlu0 %283
  %285 = vadd.xlane.f32.xlu0 %v211
  %v286 = vpop.xlane.xlu0 %285
  %287 = vadd.xlane.f32.xlu0 %v214
  %v288 = vpop.xlane.xlu0 %287
  %289 = vadd.xlane.f32.xlu0 %v216
  %v290 = vpop.xlane.xlu0 %289
  %291 = vadd.xlane.f32.xlu0 %v219
  %v292 = vpop.xlane.xlu0 %291
  %293 = vadd.xlane.f32.xlu0 %v221
  %v294 = vpop.xlane.xlu0 %293
  %295 = vadd.xlane.f32.xlu0 %v224
  %v296 = vpop.xlane.xlu0 %295
  %297 = vadd.xlane.f32.xlu0 %v226
  %v298 = vpop.xlane.xlu0 %297
  %299 = vadd.xlane.f32.xlu0 %v229
  %v300 = vpop.xlane.xlu0 %299
  %301 = vadd.xlane.f32.xlu0 %v231
  %v302 = vpop.xlane.xlu0 %301
  %303 = vadd.xlane.f32.xlu0 %v234
  %v304 = vpop.xlane.xlu0 %303
  %305 = vadd.xlane.f32.xlu0 %v236
  %v306 = vpop.xlane.xlu0 %305
  %307 = vadd.xlane.f32.xlu0 %v239
  %v308 = vpop.xlane.xlu0 %307
  %309 = vadd.xlane.f32.xlu0 %v241
  %v310 = vpop.xlane.xlu0 %309
  %311 = vadd.xlane.f32.xlu0 %v244
  %v312 = vpop.xlane.xlu0 %311
  %313 = vadd.xlane.f32.xlu0 %v246
  %v314 = vpop.xlane.xlu0 %313
  %315 = vadd.xlane.f32.xlu0 %v249
  %v316 = vpop.xlane.xlu0 %315
  %317 = vadd.xlane.f32.xlu0 %v251
  %v318 = vpop.xlane.xlu0 %317
  %319 = vadd.xlane.f32.xlu0 %v254
  %v320 = vpop.xlane.xlu0 %319
  %321 = vadd.xlane.f32.xlu0 %v256
  %v322 = vpop.xlane.xlu0 %321
  %323 = vadd.xlane.f32.xlu0 %v259
  %v324 = vpop.xlane.xlu0 %323
  %325 = vadd.xlane.f32.xlu0 %v261
  %v326 = vpop.xlane.xlu0 %325
  %v327 = vmul.f32 %v184, %v184
  %v328 = vmul.f32 %v186, %v186
  %v329 = vmul.f32 %v189, %v189
  %v330 = vmul.f32 %v191, %v191
  %v331 = vmul.f32 %v194, %v194
  %v332 = vmul.f32 %v196, %v196
  %v333 = vmul.f32 %v199, %v199
  %v334 = vmul.f32 %v201, %v201
  %v335 = vmul.f32 %v204, %v204
  %v336 = vmul.f32 %v206, %v206
  %v337 = vmul.f32 %v209, %v209
  %v338 = vmul.f32 %v211, %v211
  %v339 = vmul.f32 %v214, %v214
  %v340 = vmul.f32 %v216, %v216
  %v341 = vmul.f32 %v219, %v219
  %v342 = vmul.f32 %v221, %v221
  %v343 = vmul.f32 %v224, %v224
  %v344 = vmul.f32 %v226, %v226
  %v345 = vmul.f32 %v229, %v229
  %v346 = vmul.f32 %v231, %v231
  %v347 = vmul.f32 %v234, %v234
  %v348 = vmul.f32 %v236, %v236
  %v349 = vmul.f32 %v239, %v239
  %v350 = vmul.f32 %v241, %v241
  %v351 = vmul.f32 %v244, %v244
  %v352 = vmul.f32 %v246, %v246
  %v353 = vmul.f32 %v249, %v249
  %v354 = vmul.f32 %v251, %v251
  %v355 = vmul.f32 %v254, %v254
  %v356 = vmul.f32 %v256, %v256
  %v357 = vmul.f32 %v259, %v259
  %v358 = vmul.f32 %v261, %v261
  %359 = vadd.xlane.f32.xlu0 %v327
  %v360 = vpop.xlane.xlu0 %359
  %361 = vadd.xlane.f32.xlu0 %v328
  %v362 = vpop.xlane.xlu0 %361
  %363 = vadd.xlane.f32.xlu0 %v329
  %v364 = vpop.xlane.xlu0 %363
  %365 = vadd.xlane.f32.xlu0 %v330
  %v366 = vpop.xlane.xlu0 %365
  %367 = vadd.xlane.f32.xlu0 %v331
  %v368 = vpop.xlane.xlu0 %367
  %369 = vadd.xlane.f32.xlu0 %v332
  %v370 = vpop.xlane.xlu0 %369
  %371 = vadd.xlane.f32.xlu0 %v333
  %v372 = vpop.xlane.xlu0 %371
  %373 = vadd.xlane.f32.xlu0 %v334
  %v374 = vpop.xlane.xlu0 %373
  %375 = vadd.xlane.f32.xlu0 %v335
  %v376 = vpop.xlane.xlu0 %375
  %377 = vadd.xlane.f32.xlu0 %v336
  %v378 = vpop.xlane.xlu0 %377
  %379 = vadd.xlane.f32.xlu0 %v337
  %v380 = vpop.xlane.xlu0 %379
  %381 = vadd.xlane.f32.xlu0 %v338
  %v382 = vpop.xlane.xlu0 %381
  %383 = vadd.xlane.f32.xlu0 %v339
  %v384 = vpop.xlane.xlu0 %383
  %385 = vadd.xlane.f32.xlu0 %v340
  %v386 = vpop.xlane.xlu0 %385
  %387 = vadd.xlane.f32.xlu0 %v341
  %v388 = vpop.xlane.xlu0 %387
  %389 = vadd.xlane.f32.xlu0 %v342
  %v390 = vpop.xlane.xlu0 %389
  %391 = vadd.xlane.f32.xlu0 %v343
  %v392 = vpop.xlane.xlu0 %391
  %393 = vadd.xlane.f32.xlu0 %v344
  %v394 = vpop.xlane.xlu0 %393
  %395 = vadd.xlane.f32.xlu0 %v345
  %v396 = vpop.xlane.xlu0 %395
  %397 = vadd.xlane.f32.xlu0 %v346
  %v398 = vpop.xlane.xlu0 %397
  %399 = vadd.xlane.f32.xlu0 %v347
  %v400 = vpop.xlane.xlu0 %399
  %401 = vadd.xlane.f32.xlu0 %v348
  %v402 = vpop.xlane.xlu0 %401
  %403 = vadd.xlane.f32.xlu0 %v349
  %v404 = vpop.xlane.xlu0 %403
  %405 = vadd.xlane.f32.xlu0 %v350
  %v406 = vpop.xlane.xlu0 %405
  %407 = vadd.xlane.f32.xlu0 %v351
  %v408 = vpop.xlane.xlu0 %407
  %409 = vadd.xlane.f32.xlu0 %v352
  %v410 = vpop.xlane.xlu0 %409
  %411 = vadd.xlane.f32.xlu0 %v353
  %v412 = vpop.xlane.xlu0 %411
  %413 = vadd.xlane.f32.xlu0 %v354
  %v414 = vpop.xlane.xlu0 %413
  %415 = vadd.xlane.f32.xlu0 %v355
  %v416 = vpop.xlane.xlu0 %415
  %417 = vadd.xlane.f32.xlu0 %v356
  %v418 = vpop.xlane.xlu0 %417
  %419 = vadd.xlane.f32.xlu0 %v357
  %v420 = vpop.xlane.xlu0 %419
  %421 = vadd.xlane.f32.xlu0 %v358
  %v422 = vpop.xlane.xlu0 %421
  %v423 = vmul.f32 %v264, 0.0078125
  %v424 = vmul.f32 %v266, 0.0078125
  %v425 = vmul.f32 %v268, 0.0078125
  %v426 = vmul.f32 %v270, 0.0078125
  %v427 = vmul.f32 %v272, 0.0078125
  %v428 = vmul.f32 %v274, 0.0078125
  %v429 = vmul.f32 %v276, 0.0078125
  %v430 = vmul.f32 %v278, 0.0078125
  %v431 = vmul.f32 %v280, 0.0078125
  %v432 = vmul.f32 %v282, 0.0078125
  %v433 = vmul.f32 %v284, 0.0078125
  %v434 = vmul.f32 %v286, 0.0078125
  %v435 = vmul.f32 %v288, 0.0078125
  %v436 = vmul.f32 %v290, 0.0078125
  %v437 = vmul.f32 %v292, 0.0078125
  %v438 = vmul.f32 %v294, 0.0078125
  %v439 = vmul.f32 %v296, 0.0078125
  %v440 = vmul.f32 %v298, 0.0078125
  %v441 = vmul.f32 %v300, 0.0078125
  %v442 = vmul.f32 %v302, 0.0078125
  %v443 = vmul.f32 %v304, 0.0078125
  %v444 = vmul.f32 %v306, 0.0078125
  %v445 = vmul.f32 %v308, 0.0078125
  %v446 = vmul.f32 %v310, 0.0078125
  %v447 = vmul.f32 %v312, 0.0078125
  %v448 = vmul.f32 %v314, 0.0078125
  %v449 = vmul.f32 %v316, 0.0078125
  %v450 = vmul.f32 %v318, 0.0078125
  %v451 = vmul.f32 %v320, 0.0078125
  %v452 = vmul.f32 %v322, 0.0078125
  %v453 = vmul.f32 %v324, 0.0078125
  %v454 = vmul.f32 %v326, 0.0078125
  %v455 = vmul.f32 %v360, 0.0078125
  %v456 = vmul.f32 %v362, 0.0078125
  %v457 = vmul.f32 %v364, 0.0078125
  %v458 = vmul.f32 %v366, 0.0078125
  %v459 = vmul.f32 %v368, 0.0078125
  %v460 = vmul.f32 %v370, 0.0078125
  %v461 = vmul.f32 %v372, 0.0078125
  %v462 = vmul.f32 %v374, 0.0078125
  %v463 = vmul.f32 %v376, 0.0078125
  %v464 = vmul.f32 %v378, 0.0078125
  %v465 = vmul.f32 %v380, 0.0078125
  %v466 = vmul.f32 %v382, 0.0078125
  %v467 = vmul.f32 %v384, 0.0078125
  %v468 = vmul.f32 %v386, 0.0078125
  %v469 = vmul.f32 %v388, 0.0078125
  %v470 = vmul.f32 %v390, 0.0078125
  %v471 = vmul.f32 %v392, 0.0078125
  %v472 = vmul.f32 %v394, 0.0078125
  %v473 = vmul.f32 %v396, 0.0078125
  %v474 = vmul.f32 %v398, 0.0078125
  %v475 = vmul.f32 %v400, 0.0078125
  %v476 = vmul.f32 %v402, 0.0078125
  %v477 = vmul.f32 %v404, 0.0078125
  %v478 = vmul.f32 %v406, 0.0078125
  %v479 = vmul.f32 %v408, 0.0078125
  %v480 = vmul.f32 %v410, 0.0078125
  %v481 = vmul.f32 %v412, 0.0078125
  %v482 = vmul.f32 %v414, 0.0078125
  %v483 = vmul.f32 %v416, 0.0078125
  %v484 = vmul.f32 %v418, 0.0078125
  %v485 = vmul.f32 %v420, 0.0078125
  %v486 = vmul.f32 %v422, 0.0078125
  %v487 = vmul.f32 %v423, %v423
  %v488 = vmul.f32 %v424, %v424
  %v489 = vmul.f32 %v425, %v425
  %v490 = vmul.f32 %v426, %v426
  %v491 = vmul.f32 %v427, %v427
  %v492 = vmul.f32 %v428, %v428
  %v493 = vmul.f32 %v429, %v429
  %v494 = vmul.f32 %v430, %v430
  %v495 = vmul.f32 %v431, %v431
  %v496 = vmul.f32 %v432, %v432
  %v497 = vmul.f32 %v433, %v433
  %v498 = vmul.f32 %v434, %v434
  %v499 = vmul.f32 %v435, %v435
  %v500 = vmul.f32 %v436, %v436
  %v501 = vmul.f32 %v437, %v437
  %v502 = vmul.f32 %v438, %v438
  %v503 = vmul.f32 %v439, %v439
  %v504 = vmul.f32 %v440, %v440
  %v505 = vmul.f32 %v441, %v441
  %v506 = vmul.f32 %v442, %v442
  %v507 = vmul.f32 %v443, %v443
  %v508 = vmul.f32 %v444, %v444
  %v509 = vmul.f32 %v445, %v445
  %v510 = vmul.f32 %v446, %v446
  %v511 = vmul.f32 %v447, %v447
  %v512 = vmul.f32 %v448, %v448
  %v513 = vmul.f32 %v449, %v449
  %v514 = vmul.f32 %v450, %v450
  %v515 = vmul.f32 %v451, %v451
  %v516 = vmul.f32 %v452, %v452
  %v517 = vmul.f32 %v453, %v453
  %v518 = vmul.f32 %v454, %v454
  %v519 = vsub.f32 %v455, %v487
  %v520 = vsub.f32 %v456, %v488
  %v521 = vsub.f32 %v457, %v489
  %v522 = vsub.f32 %v458, %v490
  %v523 = vsub.f32 %v459, %v491
  %v524 = vsub.f32 %v460, %v492
  %v525 = vsub.f32 %v461, %v493
  %v526 = vsub.f32 %v462, %v494
  %v527 = vsub.f32 %v463, %v495
  %v528 = vsub.f32 %v464, %v496
  %v529 = vsub.f32 %v465, %v497
  %v530 = vsub.f32 %v466, %v498
  %v531 = vsub.f32 %v467, %v499
  %v532 = vsub.f32 %v468, %v500
  %v533 = vsub.f32 %v469, %v501
  %v534 = vsub.f32 %v470, %v502
  %v535 = vsub.f32 %v471, %v503
  %v536 = vsub.f32 %v472, %v504
  %v537 = vsub.f32 %v473, %v505
  %v538 = vsub.f32 %v474, %v506
  %v539 = vsub.f32 %v475, %v507
  %v540 = vsub.f32 %v476, %v508
  %v541 = vsub.f32 %v477, %v509
  %v542 = vsub.f32 %v478, %v510
  %v543 = vsub.f32 %v479, %v511
  %v544 = vsub.f32 %v480, %v512
  %v545 = vsub.f32 %v481, %v513
  %v546 = vsub.f32 %v482, %v514
  %v547 = vsub.f32 %v483, %v515
  %v548 = vsub.f32 %v484, %v516
  %v549 = vsub.f32 %v485, %v517
  %v550 = vsub.f32 %v486, %v518
  %v551 = vmax.f32 %v519, 0.0
  %v552 = vmax.f32 %v520, 0.0
  %v553 = vmax.f32 %v521, 0.0
  %v554 = vmax.f32 %v522, 0.0
  %v555 = vmax.f32 %v523, 0.0
  %v556 = vmax.f32 %v524, 0.0
  %v557 = vmax.f32 %v525, 0.0
  %v558 = vmax.f32 %v526, 0.0
  %v559 = vmax.f32 %v527, 0.0
  %v560 = vmax.f32 %v528, 0.0
  %v561 = vmax.f32 %v529, 0.0
  %v562 = vmax.f32 %v530, 0.0
  %v563 = vmax.f32 %v531, 0.0
  %v564 = vmax.f32 %v532, 0.0
  %v565 = vmax.f32 %v533, 0.0
  %v566 = vmax.f32 %v534, 0.0
  %v567 = vmax.f32 %v535, 0.0
  %v568 = vmax.f32 %v536, 0.0
  %v569 = vmax.f32 %v537, 0.0
  %v570 = vmax.f32 %v538, 0.0
  %v571 = vmax.f32 %v539, 0.0
  %v572 = vmax.f32 %v540, 0.0
  %v573 = vmax.f32 %v541, 0.0
  %v574 = vmax.f32 %v542, 0.0
  %v575 = vmax.f32 %v543, 0.0
  %v576 = vmax.f32 %v544, 0.0
  %v577 = vmax.f32 %v545, 0.0
  %v578 = vmax.f32 %v546, 0.0
  %v579 = vmax.f32 %v547, 0.0
  %v580 = vmax.f32 %v548, 0.0
  %v581 = vmax.f32 %v549, 0.0
  %v582 = vmax.f32 %v550, 0.0
  %v583 = vsub.f32 %v184, %v423
  %v584 = vsub.f32 %v186, %v424
  %v585 = vsub.f32 %v189, %v425
  %v586 = vsub.f32 %v191, %v426
  %v587 = vsub.f32 %v194, %v427
  %v588 = vsub.f32 %v196, %v428
  %v589 = vsub.f32 %v199, %v429
  %v590 = vsub.f32 %v201, %v430
  %v591 = vsub.f32 %v204, %v431
  %v592 = vsub.f32 %v206, %v432
  %v593 = vsub.f32 %v209, %v433
  %v594 = vsub.f32 %v211, %v434
  %v595 = vsub.f32 %v214, %v435
  %v596 = vsub.f32 %v216, %v436
  %v597 = vsub.f32 %v219, %v437
  %v598 = vsub.f32 %v221, %v438
  %v599 = vsub.f32 %v224, %v439
  %v600 = vsub.f32 %v226, %v440
  %v601 = vsub.f32 %v229, %v441
  %v602 = vsub.f32 %v231, %v442
  %v603 = vsub.f32 %v234, %v443
  %v604 = vsub.f32 %v236, %v444
  %v605 = vsub.f32 %v239, %v445
  %v606 = vsub.f32 %v241, %v446
  %v607 = vsub.f32 %v244, %v447
  %v608 = vsub.f32 %v246, %v448
  %v609 = vsub.f32 %v249, %v449
  %v610 = vsub.f32 %v251, %v450
  %v611 = vsub.f32 %v254, %v451
  %v612 = vsub.f32 %v256, %v452
  %v613 = vsub.f32 %v259, %v453
  %v614 = vsub.f32 %v261, %v454
  %v615 = vadd.f32 %v551, 1e-05
  %v616 = vadd.f32 %v552, 1e-05
  %v617 = vadd.f32 %v553, 1e-05
  %v618 = vadd.f32 %v554, 1e-05
  %v619 = vadd.f32 %v555, 1e-05
  %v620 = vadd.f32 %v556, 1e-05
  %v621 = vadd.f32 %v557, 1e-05
  %v622 = vadd.f32 %v558, 1e-05
  %v623 = vadd.f32 %v559, 1e-05
  %v624 = vadd.f32 %v560, 1e-05
  %v625 = vadd.f32 %v561, 1e-05
  %v626 = vadd.f32 %v562, 1e-05
  %v627 = vadd.f32 %v563, 1e-05
  %v628 = vadd.f32 %v564, 1e-05
  %v629 = vadd.f32 %v565, 1e-05
  %v630 = vadd.f32 %v566, 1e-05
  %v631 = vadd.f32 %v567, 1e-05
  %v632 = vadd.f32 %v568, 1e-05
  %v633 = vadd.f32 %v569, 1e-05
  %v634 = vadd.f32 %v570, 1e-05
  %v635 = vadd.f32 %v571, 1e-05
  %v636 = vadd.f32 %v572, 1e-05
  %v637 = vadd.f32 %v573, 1e-05
  %v638 = vadd.f32 %v574, 1e-05
  %v639 = vadd.f32 %v575, 1e-05
  %v640 = vadd.f32 %v576, 1e-05
  %v641 = vadd.f32 %v577, 1e-05
  %v642 = vadd.f32 %v578, 1e-05
  %v643 = vadd.f32 %v579, 1e-05
  %v644 = vadd.f32 %v580, 1e-05
  %v645 = vadd.f32 %v581, 1e-05
  %v646 = vadd.f32 %v582, 1e-05
  %v647 = vrsqrt.pop %v615
  %v648 = vmul.f32 %v647, %v615
  %v649 = vmul.f32 %v648, %v647
  %v650 = vmul.f32 0.5, %v649
  %v651 = vsub.f32 1.5, %v650
  %v652 = vmul.f32 %v647, %v651
  %vm653 = vweird.f32 %v615
  %vm654 = vweird.f32 %v647
  %vm655 = vmor %vm653, %vm654
  %v656 = vsel %vm655, %v647, %v652
  %v657 = vrsqrt.pop %v616
  %v658 = vmul.f32 %v657, %v616
  %v659 = vmul.f32 %v658, %v657
  %v660 = vmul.f32 0.5, %v659
  %v661 = vsub.f32 1.5, %v660
  %v662 = vmul.f32 %v657, %v661
  %vm663 = vweird.f32 %v616
  %vm664 = vweird.f32 %v657
  %vm665 = vmor %vm663, %vm664
  %v666 = vsel %vm665, %v657, %v662
  %v667 = vrsqrt.pop %v617
  %v668 = vmul.f32 %v667, %v617
  %v669 = vmul.f32 %v668, %v667
  %v670 = vmul.f32 0.5, %v669
  %v671 = vsub.f32 1.5, %v670
  %v672 = vmul.f32 %v667, %v671
  %vm673 = vweird.f32 %v617
  %vm674 = vweird.f32 %v667
  %vm675 = vmor %vm673, %vm674
  %v676 = vsel %vm675, %v667, %v672
  %v677 = vrsqrt.pop %v618
  %v678 = vmul.f32 %v677, %v618
  %v679 = vmul.f32 %v678, %v677
  %v680 = vmul.f32 0.5, %v679
  %v681 = vsub.f32 1.5, %v680
  %v682 = vmul.f32 %v677, %v681
  %vm683 = vweird.f32 %v618
  %vm684 = vweird.f32 %v677
  %vm685 = vmor %vm683, %vm684
  %v686 = vsel %vm685, %v677, %v682
  %v687 = vrsqrt.pop %v619
  %v688 = vmul.f32 %v687, %v619
  %v689 = vmul.f32 %v688, %v687
  %v690 = vmul.f32 0.5, %v689
  %v691 = vsub.f32 1.5, %v690
  %v692 = vmul.f32 %v687, %v691
  %vm693 = vweird.f32 %v619
  %vm694 = vweird.f32 %v687
  %vm695 = vmor %vm693, %vm694
  %v696 = vsel %vm695, %v687, %v692
  %v697 = vrsqrt.pop %v620
  %v698 = vmul.f32 %v697, %v620
  %v699 = vmul.f32 %v698, %v697
  %v700 = vmul.f32 0.5, %v699
  %v701 = vsub.f32 1.5, %v700
  %v702 = vmul.f32 %v697, %v701
  %vm703 = vweird.f32 %v620
  %vm704 = vweird.f32 %v697
  %vm705 = vmor %vm703, %vm704
  %v706 = vsel %vm705, %v697, %v702
  %v707 = vrsqrt.pop %v621
  %v708 = vmul.f32 %v707, %v621
  %v709 = vmul.f32 %v708, %v707
  %v710 = vmul.f32 0.5, %v709
  %v711 = vsub.f32 1.5, %v710
  %v712 = vmul.f32 %v707, %v711
  %vm713 = vweird.f32 %v621
  %vm714 = vweird.f32 %v707
  %vm715 = vmor %vm713, %vm714
  %v716 = vsel %vm715, %v707, %v712
  %v717 = vrsqrt.pop %v622
  %v718 = vmul.f32 %v717, %v622
  %v719 = vmul.f32 %v718, %v717
  %v720 = vmul.f32 0.5, %v719
  %v721 = vsub.f32 1.5, %v720
  %v722 = vmul.f32 %v717, %v721
  %vm723 = vweird.f32 %v622
  %vm724 = vweird.f32 %v717
  %vm725 = vmor %vm723, %vm724
  %v726 = vsel %vm725, %v717, %v722
  %v727 = vrsqrt.pop %v623
  %v728 = vmul.f32 %v727, %v623
  %v729 = vmul.f32 %v728, %v727
  %v730 = vmul.f32 0.5, %v729
  %v731 = vsub.f32 1.5, %v730
  %v732 = vmul.f32 %v727, %v731
  %vm733 = vweird.f32 %v623
  %vm734 = vweird.f32 %v727
  %vm735 = vmor %vm733, %vm734
  %v736 = vsel %vm735, %v727, %v732
  %v737 = vrsqrt.pop %v624
  %v738 = vmul.f32 %v737, %v624
  %v739 = vmul.f32 %v738, %v737
  %v740 = vmul.f32 0.5, %v739
  %v741 = vsub.f32 1.5, %v740
  %v742 = vmul.f32 %v737, %v741
  %vm743 = vweird.f32 %v624
  %vm744 = vweird.f32 %v737
  %vm745 = vmor %vm743, %vm744
  %v746 = vsel %vm745, %v737, %v742
  %v747 = vrsqrt.pop %v625
  %v748 = vmul.f32 %v747, %v625
  %v749 = vmul.f32 %v748, %v747
  %v750 = vmul.f32 0.5, %v749
  %v751 = vsub.f32 1.5, %v750
  %v752 = vmul.f32 %v747, %v751
  %vm753 = vweird.f32 %v625
  %vm754 = vweird.f32 %v747
  %vm755 = vmor %vm753, %vm754
  %v756 = vsel %vm755, %v747, %v752
  %v757 = vrsqrt.pop %v626
  %v758 = vmul.f32 %v757, %v626
  %v759 = vmul.f32 %v758, %v757
  %v760 = vmul.f32 0.5, %v759
  %v761 = vsub.f32 1.5, %v760
  %v762 = vmul.f32 %v757, %v761
  %vm763 = vweird.f32 %v626
  %vm764 = vweird.f32 %v757
  %vm765 = vmor %vm763, %vm764
  %v766 = vsel %vm765, %v757, %v762
  %v767 = vrsqrt.pop %v627
  %v768 = vmul.f32 %v767, %v627
  %v769 = vmul.f32 %v768, %v767
  %v770 = vmul.f32 0.5, %v769
  %v771 = vsub.f32 1.5, %v770
  %v772 = vmul.f32 %v767, %v771
  %vm773 = vweird.f32 %v627
  %vm774 = vweird.f32 %v767
  %vm775 = vmor %vm773, %vm774
  %v776 = vsel %vm775, %v767, %v772
  %v777 = vrsqrt.pop %v628
  %v778 = vmul.f32 %v777, %v628
  %v779 = vmul.f32 %v778, %v777
  %v780 = vmul.f32 0.5, %v779
  %v781 = vsub.f32 1.5, %v780
  %v782 = vmul.f32 %v777, %v781
  %vm783 = vweird.f32 %v628
  %vm784 = vweird.f32 %v777
  %vm785 = vmor %vm783, %vm784
  %v786 = vsel %vm785, %v777, %v782
  %v787 = vrsqrt.pop %v629
  %v788 = vmul.f32 %v787, %v629
  %v789 = vmul.f32 %v788, %v787
  %v790 = vmul.f32 0.5, %v789
  %v791 = vsub.f32 1.5, %v790
  %v792 = vmul.f32 %v787, %v791
  %vm793 = vweird.f32 %v629
  %vm794 = vweird.f32 %v787
  %vm795 = vmor %vm793, %vm794
  %v796 = vsel %vm795, %v787, %v792
  %v797 = vrsqrt.pop %v630
  %v798 = vmul.f32 %v797, %v630
  %v799 = vmul.f32 %v798, %v797
  %v800 = vmul.f32 0.5, %v799
  %v801 = vsub.f32 1.5, %v800
  %v802 = vmul.f32 %v797, %v801
  %vm803 = vweird.f32 %v630
  %vm804 = vweird.f32 %v797
  %vm805 = vmor %vm803, %vm804
  %v806 = vsel %vm805, %v797, %v802
  %v807 = vrsqrt.pop %v631
  %v808 = vmul.f32 %v807, %v631
  %v809 = vmul.f32 %v808, %v807
  %v810 = vmul.f32 0.5, %v809
  %v811 = vsub.f32 1.5, %v810
  %v812 = vmul.f32 %v807, %v811
  %vm813 = vweird.f32 %v631
  %vm814 = vweird.f32 %v807
  %vm815 = vmor %vm813, %vm814
  %v816 = vsel %vm815, %v807, %v812
  %v817 = vrsqrt.pop %v632
  %v818 = vmul.f32 %v817, %v632
  %v819 = vmul.f32 %v818, %v817
  %v820 = vmul.f32 0.5, %v819
  %v821 = vsub.f32 1.5, %v820
  %v822 = vmul.f32 %v817, %v821
  %vm823 = vweird.f32 %v632
  %vm824 = vweird.f32 %v817
  %vm825 = vmor %vm823, %vm824
  %v826 = vsel %vm825, %v817, %v822
  %v827 = vrsqrt.pop %v633
  %v828 = vmul.f32 %v827, %v633
  %v829 = vmul.f32 %v828, %v827
  %v830 = vmul.f32 0.5, %v829
  %v831 = vsub.f32 1.5, %v830
  %v832 = vmul.f32 %v827, %v831
  %vm833 = vweird.f32 %v633
  %vm834 = vweird.f32 %v827
  %vm835 = vmor %vm833, %vm834
  %v836 = vsel %vm835, %v827, %v832
  %v837 = vrsqrt.pop %v634
  %v838 = vmul.f32 %v837, %v634
  %v839 = vmul.f32 %v838, %v837
  %v840 = vmul.f32 0.5, %v839
  %v841 = vsub.f32 1.5, %v840
  %v842 = vmul.f32 %v837, %v841
  %vm843 = vweird.f32 %v634
  %vm844 = vweird.f32 %v837
  %vm845 = vmor %vm843, %vm844
  %v846 = vsel %vm845, %v837, %v842
  %v847 = vrsqrt.pop %v635
  %v848 = vmul.f32 %v847, %v635
  %v849 = vmul.f32 %v848, %v847
  %v850 = vmul.f32 0.5, %v849
  %v851 = vsub.f32 1.5, %v850
  %v852 = vmul.f32 %v847, %v851
  %vm853 = vweird.f32 %v635
  %vm854 = vweird.f32 %v847
  %vm855 = vmor %vm853, %vm854
  %v856 = vsel %vm855, %v847, %v852
  %v857 = vrsqrt.pop %v636
  %v858 = vmul.f32 %v857, %v636
  %v859 = vmul.f32 %v858, %v857
  %v860 = vmul.f32 0.5, %v859
  %v861 = vsub.f32 1.5, %v860
  %v862 = vmul.f32 %v857, %v861
  %vm863 = vweird.f32 %v636
  %vm864 = vweird.f32 %v857
  %vm865 = vmor %vm863, %vm864
  %v866 = vsel %vm865, %v857, %v862
  %v867 = vrsqrt.pop %v637
  %v868 = vmul.f32 %v867, %v637
  %v869 = vmul.f32 %v868, %v867
  %v870 = vmul.f32 0.5, %v869
  %v871 = vsub.f32 1.5, %v870
  %v872 = vmul.f32 %v867, %v871
  %vm873 = vweird.f32 %v637
  %vm874 = vweird.f32 %v867
  %vm875 = vmor %vm873, %vm874
  %v876 = vsel %vm875, %v867, %v872
  %v877 = vrsqrt.pop %v638
  %v878 = vmul.f32 %v877, %v638
  %v879 = vmul.f32 %v878, %v877
  %v880 = vmul.f32 0.5, %v879
  %v881 = vsub.f32 1.5, %v880
  %v882 = vmul.f32 %v877, %v881
  %vm883 = vweird.f32 %v638
  %vm884 = vweird.f32 %v877
  %vm885 = vmor %vm883, %vm884
  %v886 = vsel %vm885, %v877, %v882
  %v887 = vrsqrt.pop %v639
  %v888 = vmul.f32 %v887, %v639
  %v889 = vmul.f32 %v888, %v887
  %v890 = vmul.f32 0.5, %v889
  %v891 = vsub.f32 1.5, %v890
  %v892 = vmul.f32 %v887, %v891
  %vm893 = vweird.f32 %v639
  %vm894 = vweird.f32 %v887
  %vm895 = vmor %vm893, %vm894
  %v896 = vsel %vm895, %v887, %v892
  %v897 = vrsqrt.pop %v640
  %v898 = vmul.f32 %v897, %v640
  %v899 = vmul.f32 %v898, %v897
  %v900 = vmul.f32 0.5, %v899
  %v901 = vsub.f32 1.5, %v900
  %v902 = vmul.f32 %v897, %v901
  %vm903 = vweird.f32 %v640
  %vm904 = vweird.f32 %v897
  %vm905 = vmor %vm903, %vm904
  %v906 = vsel %vm905, %v897, %v902
  %v907 = vrsqrt.pop %v641
  %v908 = vmul.f32 %v907, %v641
  %v909 = vmul.f32 %v908, %v907
  %v910 = vmul.f32 0.5, %v909
  %v911 = vsub.f32 1.5, %v910
  %v912 = vmul.f32 %v907, %v911
  %vm913 = vweird.f32 %v641
  %vm914 = vweird.f32 %v907
  %vm915 = vmor %vm913, %vm914
  %v916 = vsel %vm915, %v907, %v912
  %v917 = vrsqrt.pop %v642
  %v918 = vmul.f32 %v917, %v642
  %v919 = vmul.f32 %v918, %v917
  %v920 = vmul.f32 0.5, %v919
  %v921 = vsub.f32 1.5, %v920
  %v922 = vmul.f32 %v917, %v921
  %vm923 = vweird.f32 %v642
  %vm924 = vweird.f32 %v917
  %vm925 = vmor %vm923, %vm924
  %v926 = vsel %vm925, %v917, %v922
  %v927 = vrsqrt.pop %v643
  %v928 = vmul.f32 %v927, %v643
  %v929 = vmul.f32 %v928, %v927
  %v930 = vmul.f32 0.5, %v929
  %v931 = vsub.f32 1.5, %v930
  %v932 = vmul.f32 %v927, %v931
  %vm933 = vweird.f32 %v643
  %vm934 = vweird.f32 %v927
  %vm935 = vmor %vm933, %vm934
  %v936 = vsel %vm935, %v927, %v932
  %v937 = vrsqrt.pop %v644
  %v938 = vmul.f32 %v937, %v644
  %v939 = vmul.f32 %v938, %v937
  %v940 = vmul.f32 0.5, %v939
  %v941 = vsub.f32 1.5, %v940
  %v942 = vmul.f32 %v937, %v941
  %vm943 = vweird.f32 %v644
  %vm944 = vweird.f32 %v937
  %vm945 = vmor %vm943, %vm944
  %v946 = vsel %vm945, %v937, %v942
  %v947 = vrsqrt.pop %v645
  %v948 = vmul.f32 %v947, %v645
  %v949 = vmul.f32 %v948, %v947
  %v950 = vmul.f32 0.5, %v949
  %v951 = vsub.f32 1.5, %v950
  %v952 = vmul.f32 %v947, %v951
  %vm953 = vweird.f32 %v645
  %vm954 = vweird.f32 %v947
  %vm955 = vmor %vm953, %vm954
  %v956 = vsel %vm955, %v947, %v952
  %v957 = vrsqrt.pop %v646
  %v958 = vmul.f32 %v957, %v646
  %v959 = vmul.f32 %v958, %v957
  %v960 = vmul.f32 0.5, %v959
  %v961 = vsub.f32 1.5, %v960
  %v962 = vmul.f32 %v957, %v961
  %vm963 = vweird.f32 %v646
  %vm964 = vweird.f32 %v957
  %vm965 = vmor %vm963, %vm964
  %v966 = vsel %vm965, %v957, %v962
  %v967 = vmul.f32 %v583, %v656
  %v968 = vmul.f32 %v584, %v666
  %v969 = vmul.f32 %v585, %v676
  %v970 = vmul.f32 %v586, %v686
  %v971 = vmul.f32 %v587, %v696
  %v972 = vmul.f32 %v588, %v706
  %v973 = vmul.f32 %v589, %v716
  %v974 = vmul.f32 %v590, %v726
  %v975 = vmul.f32 %v591, %v736
  %v976 = vmul.f32 %v592, %v746
  %v977 = vmul.f32 %v593, %v756
  %v978 = vmul.f32 %v594, %v766
  %v979 = vmul.f32 %v595, %v776
  %v980 = vmul.f32 %v596, %v786
  %v981 = vmul.f32 %v597, %v796
  %v982 = vmul.f32 %v598, %v806
  %v983 = vmul.f32 %v599, %v816
  %v984 = vmul.f32 %v600, %v826
  %v985 = vmul.f32 %v601, %v836
  %v986 = vmul.f32 %v602, %v846
  %v987 = vmul.f32 %v603, %v856
  %v988 = vmul.f32 %v604, %v866
  %v989 = vmul.f32 %v605, %v876
  %v990 = vmul.f32 %v606, %v886
  %v991 = vmul.f32 %v607, %v896
  %v992 = vmul.f32 %v608, %v906
  %v993 = vmul.f32 %v609, %v916
  %v994 = vmul.f32 %v610, %v926
  %v995 = vmul.f32 %v611, %v936
  %v996 = vmul.f32 %v612, %v946
  %v997 = vmul.f32 %v613, %v956
  %v998 = vmul.f32 %v614, %v966
  %v1000 = vperm.slane %v96, 0
  %v1002 = vmul.f32 %v967, %v1000
  %v1003 = vmul.f32 %v968, %v1000
  %v1004 = vmul.f32 %v969, %v1000
  %v1005 = vmul.f32 %v970, %v1000
  %v1006 = vmul.f32 %v971, %v1000
  %v1007 = vmul.f32 %v972, %v1000
  %v1008 = vmul.f32 %v973, %v1000
  %v1009 = vmul.f32 %v974, %v1000
  %v1010 = vmul.f32 %v975, %v1000
  %v1011 = vmul.f32 %v976, %v1000
  %v1012 = vmul.f32 %v977, %v1000
  %v1013 = vmul.f32 %v978, %v1000
  %v1014 = vmul.f32 %v979, %v1000
  %v1015 = vmul.f32 %v980, %v1000
  %v1016 = vmul.f32 %v981, %v1000
  %v1017 = vmul.f32 %v982, %v1000
  %v1018 = vmul.f32 %v983, %v1000
  %v1019 = vmul.f32 %v984, %v1000
  %v1020 = vmul.f32 %v985, %v1000
  %v1021 = vmul.f32 %v986, %v1000
  %v1022 = vmul.f32 %v987, %v1000
  %v1023 = vmul.f32 %v988, %v1000
  %v1024 = vmul.f32 %v989, %v1000
  %v1025 = vmul.f32 %v990, %v1000
  %v1026 = vmul.f32 %v991, %v1000
  %v1027 = vmul.f32 %v992, %v1000
  %v1028 = vmul.f32 %v993, %v1000
  %v1029 = vmul.f32 %v994, %v1000
  %v1030 = vmul.f32 %v995, %v1000
  %v1031 = vmul.f32 %v996, %v1000
  %v1032 = vmul.f32 %v997, %v1000
  %v1033 = vmul.f32 %v998, %v1000
  %v1035 = vperm.slane %v97, 0
  %v1037 = vadd.f32 %v1002, %v1035
  %v1038 = vadd.f32 %v1003, %v1035
  %v1039 = vadd.f32 %v1004, %v1035
  %v1040 = vadd.f32 %v1005, %v1035
  %v1041 = vadd.f32 %v1006, %v1035
  %v1042 = vadd.f32 %v1007, %v1035
  %v1043 = vadd.f32 %v1008, %v1035
  %v1044 = vadd.f32 %v1009, %v1035
  %v1045 = vadd.f32 %v1010, %v1035
  %v1046 = vadd.f32 %v1011, %v1035
  %v1047 = vadd.f32 %v1012, %v1035
  %v1048 = vadd.f32 %v1013, %v1035
  %v1049 = vadd.f32 %v1014, %v1035
  %v1050 = vadd.f32 %v1015, %v1035
  %v1051 = vadd.f32 %v1016, %v1035
  %v1052 = vadd.f32 %v1017, %v1035
  %v1053 = vadd.f32 %v1018, %v1035
  %v1054 = vadd.f32 %v1019, %v1035
  %v1055 = vadd.f32 %v1020, %v1035
  %v1056 = vadd.f32 %v1021, %v1035
  %v1057 = vadd.f32 %v1022, %v1035
  %v1058 = vadd.f32 %v1023, %v1035
  %v1059 = vadd.f32 %v1024, %v1035
  %v1060 = vadd.f32 %v1025, %v1035
  %v1061 = vadd.f32 %v1026, %v1035
  %v1062 = vadd.f32 %v1027, %v1035
  %v1063 = vadd.f32 %v1028, %v1035
  %v1064 = vadd.f32 %v1029, %v1035
  %v1065 = vadd.f32 %v1030, %v1035
  %v1066 = vadd.f32 %v1031, %v1035
  %v1067 = vadd.f32 %v1032, %v1035
  %v1068 = vadd.f32 %v1033, %v1035
  %v1069 = vmax.f32 %v1037, 0.0
  %v1070 = vmax.f32 %v1038, 0.0
  %v1071 = vmax.f32 %v1039, 0.0
  %v1072 = vmax.f32 %v1040, 0.0
  %v1073 = vmax.f32 %v1041, 0.0
  %v1074 = vmax.f32 %v1042, 0.0
  %v1075 = vmax.f32 %v1043, 0.0
  %v1076 = vmax.f32 %v1044, 0.0
  %v1077 = vmax.f32 %v1045, 0.0
  %v1078 = vmax.f32 %v1046, 0.0
  %v1079 = vmax.f32 %v1047, 0.0
  %v1080 = vmax.f32 %v1048, 0.0
  %v1081 = vmax.f32 %v1049, 0.0
  %v1082 = vmax.f32 %v1050, 0.0
  %v1083 = vmax.f32 %v1051, 0.0
  %v1084 = vmax.f32 %v1052, 0.0
  %v1085 = vmax.f32 %v1053, 0.0
  %v1086 = vmax.f32 %v1054, 0.0
  %v1087 = vmax.f32 %v1055, 0.0
  %v1088 = vmax.f32 %v1056, 0.0
  %v1089 = vmax.f32 %v1057, 0.0
  %v1090 = vmax.f32 %v1058, 0.0
  %v1091 = vmax.f32 %v1059, 0.0
  %v1092 = vmax.f32 %v1060, 0.0
  %v1093 = vmax.f32 %v1061, 0.0
  %v1094 = vmax.f32 %v1062, 0.0
  %v1095 = vmax.f32 %v1063, 0.0
  %v1096 = vmax.f32 %v1064, 0.0
  %v1097 = vmax.f32 %v1065, 0.0
  %v1098 = vmax.f32 %v1066, 0.0
  %v1099 = vmax.f32 %v1067, 0.0
  %v1100 = vmax.f32 %v1068, 0.0
  %v1101 = vpack.c.bf16 %v1070, %v1069
  %v1102 = vpack.c.bf16 %v1072, %v1071
  %v1103 = vpack.c.bf16 %v1074, %v1073
  %v1104 = vpack.c.bf16 %v1076, %v1075
  %v1105 = vpack.c.bf16 %v1078, %v1077
  %v1106 = vpack.c.bf16 %v1080, %v1079
  %v1107 = vpack.c.bf16 %v1082, %v1081
  %v1108 = vpack.c.bf16 %v1084, %v1083
  %v1109 = vpack.c.bf16 %v1086, %v1085
  %v1110 = vpack.c.bf16 %v1088, %v1087
  %v1111 = vpack.c.bf16 %v1090, %v1089
  %v1112 = vpack.c.bf16 %v1092, %v1091
  %v1113 = vpack.c.bf16 %v1094, %v1093
  %v1114 = vpack.c.bf16 %v1096, %v1095
  %v1115 = vpack.c.bf16 %v1098, %v1097
  %v1116 = vpack.c.bf16 %v1100, %v1099
  %v1117 = vld [vmem:[%s5] sm:$0xf]
  %v1118 = vld [vmem:[%s5 + $0x4] sm:$0xf]
  %v1119 = vld [vmem:[%s5 + $0x8] sm:$0xf]
  %v1120 = vld [vmem:[%s5 + $0xc] sm:$0xf]
  %v1121 = vld [vmem:[%s5 + $0x10] sm:$0xf]
  %v1122 = vld [vmem:[%s5 + $0x14] sm:$0xf]
  %v1123 = vld [vmem:[%s5 + $0x18] sm:$0xf]
  %v1124 = vld [vmem:[%s5 + $0x1c] sm:$0xf]
  %v1125 = vld [vmem:[%s5 + $0x20] sm:$0xf]
  %v1126 = vld [vmem:[%s5 + $0x24] sm:$0xf]
  %v1127 = vld [vmem:[%s5 + $0x28] sm:$0xf]
  %v1128 = vld [vmem:[%s5 + $0x2c] sm:$0xf]
  %v1129 = vld [vmem:[%s5 + $0x30] sm:$0xf]
  %v1130 = vld [vmem:[%s5 + $0x34] sm:$0xf]
  %v1131 = vld [vmem:[%s5 + $0x38] sm:$0xf]
  %v1132 = vld [vmem:[%s5 + $0x3c] sm:$0xf]
  %v1133 = vld [vmem:[%s6] sm:$0x1]
  %v1134 = vld [vmem:[%s7] sm:$0x1]
  %v1135 = vld [vmem:[%s8] sm:$0x1]
  %v1137 = vperm.slane %v1133, 0
  %v1155 = vunpack.c.l.b16 %v1117
  %v1156 = vunpack.c.l.b16 %v1118
  %v1157 = vunpack.c.l.b16 %v1119
  %v1158 = vunpack.c.l.b16 %v1120
  %v1159 = vunpack.c.l.b16 %v1121
  %v1160 = vunpack.c.l.b16 %v1122
  %v1161 = vunpack.c.l.b16 %v1123
  %v1162 = vunpack.c.l.b16 %v1124
  %v1163 = vunpack.c.l.b16 %v1125
  %v1164 = vunpack.c.l.b16 %v1126
  %v1165 = vunpack.c.l.b16 %v1127
  %v1166 = vunpack.c.l.b16 %v1128
  %v1167 = vunpack.c.l.b16 %v1129
  %v1168 = vunpack.c.l.b16 %v1130
  %v1169 = vunpack.c.l.b16 %v1131
  %v1170 = vunpack.c.l.b16 %v1132
  %v1171 = vpack.c.b16 %v1156, %v1155
  %v1172 = vpack.c.b16 %v1158, %v1157
  %v1173 = vpack.c.b16 %v1160, %v1159
  %v1174 = vpack.c.b16 %v1162, %v1161
  %v1175 = vpack.c.b16 %v1164, %v1163
  %v1176 = vpack.c.b16 %v1166, %v1165
  %v1177 = vpack.c.b16 %v1168, %v1167
  %v1178 = vpack.c.b16 %v1170, %v1169
  %1187 = vmatpush.bf16.msra.mxu0 %v1178
  %1188 = vmatpush.bf16.msra.mxu0 %v1177
  %1189 = vmatpush.bf16.msra.mxu0 %v1176
  %1190 = vmatpush.bf16.msra.mxu0 %v1175
  %1191 = vmatpush.bf16.msra.mxu0 %v1174
  %1192 = vmatpush.bf16.msra.mxu0 %v1173
  %1193 = vmatpush.bf16.msra.mxu0 %v1172
  %1194 = vmatpush.bf16.msra.mxu0 %v1171
  %1195 = vmatmul.bf16.gmra.mxu0 %v1101
  %v1196 = vpop.f32.mrf.mxu0
  %v1197 = vadd.f32 %v1137, %v1196
  %v1198 = vpop.f32.mrf.mxu0
  %v1199 = vadd.f32 %v1137, %v1198
  %1200 = vmatmul.bf16.gmra.mxu0 %v1102
  %v1201 = vpop.f32.mrf.mxu0
  %v1202 = vadd.f32 %v1137, %v1201
  %v1203 = vpop.f32.mrf.mxu0
  %v1204 = vadd.f32 %v1137, %v1203
  %1205 = vmatmul.bf16.gmra.mxu0 %v1103
  %v1206 = vpop.f32.mrf.mxu0
  %v1207 = vadd.f32 %v1137, %v1206
  %v1208 = vpop.f32.mrf.mxu0
  %v1209 = vadd.f32 %v1137, %v1208
  %1210 = vmatmul.bf16.gmra.mxu0 %v1104
  %v1211 = vpop.f32.mrf.mxu0
  %v1212 = vadd.f32 %v1137, %v1211
  %v1213 = vpop.f32.mrf.mxu0
  %v1214 = vadd.f32 %v1137, %v1213
  %1215 = vmatmul.bf16.gmra.mxu0 %v1105
  %v1216 = vpop.f32.mrf.mxu0
  %v1217 = vadd.f32 %v1137, %v1216
  %v1218 = vpop.f32.mrf.mxu0
  %v1219 = vadd.f32 %v1137, %v1218
  %1220 = vmatmul.bf16.gmra.mxu0 %v1106
  %v1221 = vpop.f32.mrf.mxu0
  %v1222 = vadd.f32 %v1137, %v1221
  %v1223 = vpop.f32.mrf.mxu0
  %v1224 = vadd.f32 %v1137, %v1223
  %1225 = vmatmul.bf16.gmra.mxu0 %v1107
  %v1226 = vpop.f32.mrf.mxu0
  %v1227 = vadd.f32 %v1137, %v1226
  %v1228 = vpop.f32.mrf.mxu0
  %v1229 = vadd.f32 %v1137, %v1228
  %1230 = vmatmul.bf16.gmra.mxu0 %v1108
  %v1231 = vpop.f32.mrf.mxu0
  %v1232 = vadd.f32 %v1137, %v1231
  %v1233 = vpop.f32.mrf.mxu0
  %v1234 = vadd.f32 %v1137, %v1233
  %1235 = vmatmul.bf16.gmra.mxu0 %v1109
  %v1236 = vpop.f32.mrf.mxu0
  %v1237 = vadd.f32 %v1137, %v1236
  %v1238 = vpop.f32.mrf.mxu0
  %v1239 = vadd.f32 %v1137, %v1238
  %1240 = vmatmul.bf16.gmra.mxu0 %v1110
  %v1241 = vpop.f32.mrf.mxu0
  %v1242 = vadd.f32 %v1137, %v1241
  %v1243 = vpop.f32.mrf.mxu0
  %v1244 = vadd.f32 %v1137, %v1243
  %1245 = vmatmul.bf16.gmra.mxu0 %v1111
  %v1246 = vpop.f32.mrf.mxu0
  %v1247 = vadd.f32 %v1137, %v1246
  %v1248 = vpop.f32.mrf.mxu0
  %v1249 = vadd.f32 %v1137, %v1248
  %1250 = vmatmul.bf16.gmra.mxu0 %v1112
  %v1251 = vpop.f32.mrf.mxu0
  %v1252 = vadd.f32 %v1137, %v1251
  %v1253 = vpop.f32.mrf.mxu0
  %v1254 = vadd.f32 %v1137, %v1253
  %1255 = vmatmul.bf16.gmra.mxu0 %v1113
  %v1256 = vpop.f32.mrf.mxu0
  %v1257 = vadd.f32 %v1137, %v1256
  %v1258 = vpop.f32.mrf.mxu0
  %v1259 = vadd.f32 %v1137, %v1258
  %1260 = vmatmul.bf16.gmra.mxu0 %v1114
  %v1261 = vpop.f32.mrf.mxu0
  %v1262 = vadd.f32 %v1137, %v1261
  %v1263 = vpop.f32.mrf.mxu0
  %v1264 = vadd.f32 %v1137, %v1263
  %1265 = vmatmul.bf16.gmra.mxu0 %v1115
  %v1266 = vpop.f32.mrf.mxu0
  %v1267 = vadd.f32 %v1137, %v1266
  %v1268 = vpop.f32.mrf.mxu0
  %v1269 = vadd.f32 %v1137, %v1268
  %1270 = vmatmul.bf16.gmra.mxu0 %v1116
  %v1271 = vpop.f32.mrf.mxu0
  %v1272 = vadd.f32 %v1137, %v1271
  %v1273 = vpop.f32.mrf.mxu0
  %v1274 = vadd.f32 %v1137, %v1273
  %1275 = vdwg.mxu0
  %1276 = vadd.xlane.f32.xlu0 %v1197
  %v1277 = vpop.xlane.xlu0 %1276
  %1278 = vadd.xlane.f32.xlu0 %v1199
  %v1279 = vpop.xlane.xlu0 %1278
  %1280 = vadd.xlane.f32.xlu0 %v1202
  %v1281 = vpop.xlane.xlu0 %1280
  %1282 = vadd.xlane.f32.xlu0 %v1204
  %v1283 = vpop.xlane.xlu0 %1282
  %1284 = vadd.xlane.f32.xlu0 %v1207
  %v1285 = vpop.xlane.xlu0 %1284
  %1286 = vadd.xlane.f32.xlu0 %v1209
  %v1287 = vpop.xlane.xlu0 %1286
  %1288 = vadd.xlane.f32.xlu0 %v1212
  %v1289 = vpop.xlane.xlu0 %1288
  %1290 = vadd.xlane.f32.xlu0 %v1214
  %v1291 = vpop.xlane.xlu0 %1290
  %1292 = vadd.xlane.f32.xlu0 %v1217
  %v1293 = vpop.xlane.xlu0 %1292
  %1294 = vadd.xlane.f32.xlu0 %v1219
  %v1295 = vpop.xlane.xlu0 %1294
  %1296 = vadd.xlane.f32.xlu0 %v1222
  %v1297 = vpop.xlane.xlu0 %1296
  %1298 = vadd.xlane.f32.xlu0 %v1224
  %v1299 = vpop.xlane.xlu0 %1298
  %1300 = vadd.xlane.f32.xlu0 %v1227
  %v1301 = vpop.xlane.xlu0 %1300
  %1302 = vadd.xlane.f32.xlu0 %v1229
  %v1303 = vpop.xlane.xlu0 %1302
  %1304 = vadd.xlane.f32.xlu0 %v1232
  %v1305 = vpop.xlane.xlu0 %1304
  %1306 = vadd.xlane.f32.xlu0 %v1234
  %v1307 = vpop.xlane.xlu0 %1306
  %1308 = vadd.xlane.f32.xlu0 %v1237
  %v1309 = vpop.xlane.xlu0 %1308
  %1310 = vadd.xlane.f32.xlu0 %v1239
  %v1311 = vpop.xlane.xlu0 %1310
  %1312 = vadd.xlane.f32.xlu0 %v1242
  %v1313 = vpop.xlane.xlu0 %1312
  %1314 = vadd.xlane.f32.xlu0 %v1244
  %v1315 = vpop.xlane.xlu0 %1314
  %1316 = vadd.xlane.f32.xlu0 %v1247
  %v1317 = vpop.xlane.xlu0 %1316
  %1318 = vadd.xlane.f32.xlu0 %v1249
  %v1319 = vpop.xlane.xlu0 %1318
  %1320 = vadd.xlane.f32.xlu0 %v1252
  %v1321 = vpop.xlane.xlu0 %1320
  %1322 = vadd.xlane.f32.xlu0 %v1254
  %v1323 = vpop.xlane.xlu0 %1322
  %1324 = vadd.xlane.f32.xlu0 %v1257
  %v1325 = vpop.xlane.xlu0 %1324
  %1326 = vadd.xlane.f32.xlu0 %v1259
  %v1327 = vpop.xlane.xlu0 %1326
  %1328 = vadd.xlane.f32.xlu0 %v1262
  %v1329 = vpop.xlane.xlu0 %1328
  %1330 = vadd.xlane.f32.xlu0 %v1264
  %v1331 = vpop.xlane.xlu0 %1330
  %1332 = vadd.xlane.f32.xlu0 %v1267
  %v1333 = vpop.xlane.xlu0 %1332
  %1334 = vadd.xlane.f32.xlu0 %v1269
  %v1335 = vpop.xlane.xlu0 %1334
  %1336 = vadd.xlane.f32.xlu0 %v1272
  %v1337 = vpop.xlane.xlu0 %1336
  %1338 = vadd.xlane.f32.xlu0 %v1274
  %v1339 = vpop.xlane.xlu0 %1338
  %v1340 = vmul.f32 %v1197, %v1197
  %v1341 = vmul.f32 %v1199, %v1199
  %v1342 = vmul.f32 %v1202, %v1202
  %v1343 = vmul.f32 %v1204, %v1204
  %v1344 = vmul.f32 %v1207, %v1207
  %v1345 = vmul.f32 %v1209, %v1209
  %v1346 = vmul.f32 %v1212, %v1212
  %v1347 = vmul.f32 %v1214, %v1214
  %v1348 = vmul.f32 %v1217, %v1217
  %v1349 = vmul.f32 %v1219, %v1219
  %v1350 = vmul.f32 %v1222, %v1222
  %v1351 = vmul.f32 %v1224, %v1224
  %v1352 = vmul.f32 %v1227, %v1227
  %v1353 = vmul.f32 %v1229, %v1229
  %v1354 = vmul.f32 %v1232, %v1232
  %v1355 = vmul.f32 %v1234, %v1234
  %v1356 = vmul.f32 %v1237, %v1237
  %v1357 = vmul.f32 %v1239, %v1239
  %v1358 = vmul.f32 %v1242, %v1242
  %v1359 = vmul.f32 %v1244, %v1244
  %v1360 = vmul.f32 %v1247, %v1247
  %v1361 = vmul.f32 %v1249, %v1249
  %v1362 = vmul.f32 %v1252, %v1252
  %v1363 = vmul.f32 %v1254, %v1254
  %v1364 = vmul.f32 %v1257, %v1257
  %v1365 = vmul.f32 %v1259, %v1259
  %v1366 = vmul.f32 %v1262, %v1262
  %v1367 = vmul.f32 %v1264, %v1264
  %v1368 = vmul.f32 %v1267, %v1267
  %v1369 = vmul.f32 %v1269, %v1269
  %v1370 = vmul.f32 %v1272, %v1272
  %v1371 = vmul.f32 %v1274, %v1274
  %1372 = vadd.xlane.f32.xlu0 %v1340
  %v1373 = vpop.xlane.xlu0 %1372
  %1374 = vadd.xlane.f32.xlu0 %v1341
  %v1375 = vpop.xlane.xlu0 %1374
  %1376 = vadd.xlane.f32.xlu0 %v1342
  %v1377 = vpop.xlane.xlu0 %1376
  %1378 = vadd.xlane.f32.xlu0 %v1343
  %v1379 = vpop.xlane.xlu0 %1378
  %1380 = vadd.xlane.f32.xlu0 %v1344
  %v1381 = vpop.xlane.xlu0 %1380
  %1382 = vadd.xlane.f32.xlu0 %v1345
  %v1383 = vpop.xlane.xlu0 %1382
  %1384 = vadd.xlane.f32.xlu0 %v1346
  %v1385 = vpop.xlane.xlu0 %1384
  %1386 = vadd.xlane.f32.xlu0 %v1347
  %v1387 = vpop.xlane.xlu0 %1386
  %1388 = vadd.xlane.f32.xlu0 %v1348
  %v1389 = vpop.xlane.xlu0 %1388
  %1390 = vadd.xlane.f32.xlu0 %v1349
  %v1391 = vpop.xlane.xlu0 %1390
  %1392 = vadd.xlane.f32.xlu0 %v1350
  %v1393 = vpop.xlane.xlu0 %1392
  %1394 = vadd.xlane.f32.xlu0 %v1351
  %v1395 = vpop.xlane.xlu0 %1394
  %1396 = vadd.xlane.f32.xlu0 %v1352
  %v1397 = vpop.xlane.xlu0 %1396
  %1398 = vadd.xlane.f32.xlu0 %v1353
  %v1399 = vpop.xlane.xlu0 %1398
  %1400 = vadd.xlane.f32.xlu0 %v1354
  %v1401 = vpop.xlane.xlu0 %1400
  %1402 = vadd.xlane.f32.xlu0 %v1355
  %v1403 = vpop.xlane.xlu0 %1402
  %1404 = vadd.xlane.f32.xlu0 %v1356
  %v1405 = vpop.xlane.xlu0 %1404
  %1406 = vadd.xlane.f32.xlu0 %v1357
  %v1407 = vpop.xlane.xlu0 %1406
  %1408 = vadd.xlane.f32.xlu0 %v1358
  %v1409 = vpop.xlane.xlu0 %1408
  %1410 = vadd.xlane.f32.xlu0 %v1359
  %v1411 = vpop.xlane.xlu0 %1410
  %1412 = vadd.xlane.f32.xlu0 %v1360
  %v1413 = vpop.xlane.xlu0 %1412
  %1414 = vadd.xlane.f32.xlu0 %v1361
  %v1415 = vpop.xlane.xlu0 %1414
  %1416 = vadd.xlane.f32.xlu0 %v1362
  %v1417 = vpop.xlane.xlu0 %1416
  %1418 = vadd.xlane.f32.xlu0 %v1363
  %v1419 = vpop.xlane.xlu0 %1418
  %1420 = vadd.xlane.f32.xlu0 %v1364
  %v1421 = vpop.xlane.xlu0 %1420
  %1422 = vadd.xlane.f32.xlu0 %v1365
  %v1423 = vpop.xlane.xlu0 %1422
  %1424 = vadd.xlane.f32.xlu0 %v1366
  %v1425 = vpop.xlane.xlu0 %1424
  %1426 = vadd.xlane.f32.xlu0 %v1367
  %v1427 = vpop.xlane.xlu0 %1426
  %1428 = vadd.xlane.f32.xlu0 %v1368
  %v1429 = vpop.xlane.xlu0 %1428
  %1430 = vadd.xlane.f32.xlu0 %v1369
  %v1431 = vpop.xlane.xlu0 %1430
  %1432 = vadd.xlane.f32.xlu0 %v1370
  %v1433 = vpop.xlane.xlu0 %1432
  %1434 = vadd.xlane.f32.xlu0 %v1371
  %v1435 = vpop.xlane.xlu0 %1434
  %v1436 = vmul.f32 %v1277, 0.0078125
  %v1437 = vmul.f32 %v1279, 0.0078125
  %v1438 = vmul.f32 %v1281, 0.0078125
  %v1439 = vmul.f32 %v1283, 0.0078125
  %v1440 = vmul.f32 %v1285, 0.0078125
  %v1441 = vmul.f32 %v1287, 0.0078125
  %v1442 = vmul.f32 %v1289, 0.0078125
  %v1443 = vmul.f32 %v1291, 0.0078125
  %v1444 = vmul.f32 %v1293, 0.0078125
  %v1445 = vmul.f32 %v1295, 0.0078125
  %v1446 = vmul.f32 %v1297, 0.0078125
  %v1447 = vmul.f32 %v1299, 0.0078125
  %v1448 = vmul.f32 %v1301, 0.0078125
  %v1449 = vmul.f32 %v1303, 0.0078125
  %v1450 = vmul.f32 %v1305, 0.0078125
  %v1451 = vmul.f32 %v1307, 0.0078125
  %v1452 = vmul.f32 %v1309, 0.0078125
  %v1453 = vmul.f32 %v1311, 0.0078125
  %v1454 = vmul.f32 %v1313, 0.0078125
  %v1455 = vmul.f32 %v1315, 0.0078125
  %v1456 = vmul.f32 %v1317, 0.0078125
  %v1457 = vmul.f32 %v1319, 0.0078125
  %v1458 = vmul.f32 %v1321, 0.0078125
  %v1459 = vmul.f32 %v1323, 0.0078125
  %v1460 = vmul.f32 %v1325, 0.0078125
  %v1461 = vmul.f32 %v1327, 0.0078125
  %v1462 = vmul.f32 %v1329, 0.0078125
  %v1463 = vmul.f32 %v1331, 0.0078125
  %v1464 = vmul.f32 %v1333, 0.0078125
  %v1465 = vmul.f32 %v1335, 0.0078125
  %v1466 = vmul.f32 %v1337, 0.0078125
  %v1467 = vmul.f32 %v1339, 0.0078125
  %v1468 = vmul.f32 %v1373, 0.0078125
  %v1469 = vmul.f32 %v1375, 0.0078125
  %v1470 = vmul.f32 %v1377, 0.0078125
  %v1471 = vmul.f32 %v1379, 0.0078125
  %v1472 = vmul.f32 %v1381, 0.0078125
  %v1473 = vmul.f32 %v1383, 0.0078125
  %v1474 = vmul.f32 %v1385, 0.0078125
  %v1475 = vmul.f32 %v1387, 0.0078125
  %v1476 = vmul.f32 %v1389, 0.0078125
  %v1477 = vmul.f32 %v1391, 0.0078125
  %v1478 = vmul.f32 %v1393, 0.0078125
  %v1479 = vmul.f32 %v1395, 0.0078125
  %v1480 = vmul.f32 %v1397, 0.0078125
  %v1481 = vmul.f32 %v1399, 0.0078125
  %v1482 = vmul.f32 %v1401, 0.0078125
  %v1483 = vmul.f32 %v1403, 0.0078125
  %v1484 = vmul.f32 %v1405, 0.0078125
  %v1485 = vmul.f32 %v1407, 0.0078125
  %v1486 = vmul.f32 %v1409, 0.0078125
  %v1487 = vmul.f32 %v1411, 0.0078125
  %v1488 = vmul.f32 %v1413, 0.0078125
  %v1489 = vmul.f32 %v1415, 0.0078125
  %v1490 = vmul.f32 %v1417, 0.0078125
  %v1491 = vmul.f32 %v1419, 0.0078125
  %v1492 = vmul.f32 %v1421, 0.0078125
  %v1493 = vmul.f32 %v1423, 0.0078125
  %v1494 = vmul.f32 %v1425, 0.0078125
  %v1495 = vmul.f32 %v1427, 0.0078125
  %v1496 = vmul.f32 %v1429, 0.0078125
  %v1497 = vmul.f32 %v1431, 0.0078125
  %v1498 = vmul.f32 %v1433, 0.0078125
  %v1499 = vmul.f32 %v1435, 0.0078125
  %v1500 = vmul.f32 %v1436, %v1436
  %v1501 = vmul.f32 %v1437, %v1437
  %v1502 = vmul.f32 %v1438, %v1438
  %v1503 = vmul.f32 %v1439, %v1439
  %v1504 = vmul.f32 %v1440, %v1440
  %v1505 = vmul.f32 %v1441, %v1441
  %v1506 = vmul.f32 %v1442, %v1442
  %v1507 = vmul.f32 %v1443, %v1443
  %v1508 = vmul.f32 %v1444, %v1444
  %v1509 = vmul.f32 %v1445, %v1445
  %v1510 = vmul.f32 %v1446, %v1446
  %v1511 = vmul.f32 %v1447, %v1447
  %v1512 = vmul.f32 %v1448, %v1448
  %v1513 = vmul.f32 %v1449, %v1449
  %v1514 = vmul.f32 %v1450, %v1450
  %v1515 = vmul.f32 %v1451, %v1451
  %v1516 = vmul.f32 %v1452, %v1452
  %v1517 = vmul.f32 %v1453, %v1453
  %v1518 = vmul.f32 %v1454, %v1454
  %v1519 = vmul.f32 %v1455, %v1455
  %v1520 = vmul.f32 %v1456, %v1456
  %v1521 = vmul.f32 %v1457, %v1457
  %v1522 = vmul.f32 %v1458, %v1458
  %v1523 = vmul.f32 %v1459, %v1459
  %v1524 = vmul.f32 %v1460, %v1460
  %v1525 = vmul.f32 %v1461, %v1461
  %v1526 = vmul.f32 %v1462, %v1462
  %v1527 = vmul.f32 %v1463, %v1463
  %v1528 = vmul.f32 %v1464, %v1464
  %v1529 = vmul.f32 %v1465, %v1465
  %v1530 = vmul.f32 %v1466, %v1466
  %v1531 = vmul.f32 %v1467, %v1467
  %v1532 = vsub.f32 %v1468, %v1500
  %v1533 = vsub.f32 %v1469, %v1501
  %v1534 = vsub.f32 %v1470, %v1502
  %v1535 = vsub.f32 %v1471, %v1503
  %v1536 = vsub.f32 %v1472, %v1504
  %v1537 = vsub.f32 %v1473, %v1505
  %v1538 = vsub.f32 %v1474, %v1506
  %v1539 = vsub.f32 %v1475, %v1507
  %v1540 = vsub.f32 %v1476, %v1508
  %v1541 = vsub.f32 %v1477, %v1509
  %v1542 = vsub.f32 %v1478, %v1510
  %v1543 = vsub.f32 %v1479, %v1511
  %v1544 = vsub.f32 %v1480, %v1512
  %v1545 = vsub.f32 %v1481, %v1513
  %v1546 = vsub.f32 %v1482, %v1514
  %v1547 = vsub.f32 %v1483, %v1515
  %v1548 = vsub.f32 %v1484, %v1516
  %v1549 = vsub.f32 %v1485, %v1517
  %v1550 = vsub.f32 %v1486, %v1518
  %v1551 = vsub.f32 %v1487, %v1519
  %v1552 = vsub.f32 %v1488, %v1520
  %v1553 = vsub.f32 %v1489, %v1521
  %v1554 = vsub.f32 %v1490, %v1522
  %v1555 = vsub.f32 %v1491, %v1523
  %v1556 = vsub.f32 %v1492, %v1524
  %v1557 = vsub.f32 %v1493, %v1525
  %v1558 = vsub.f32 %v1494, %v1526
  %v1559 = vsub.f32 %v1495, %v1527
  %v1560 = vsub.f32 %v1496, %v1528
  %v1561 = vsub.f32 %v1497, %v1529
  %v1562 = vsub.f32 %v1498, %v1530
  %v1563 = vsub.f32 %v1499, %v1531
  %v1564 = vmax.f32 %v1532, 0.0
  %v1565 = vmax.f32 %v1533, 0.0
  %v1566 = vmax.f32 %v1534, 0.0
  %v1567 = vmax.f32 %v1535, 0.0
  %v1568 = vmax.f32 %v1536, 0.0
  %v1569 = vmax.f32 %v1537, 0.0
  %v1570 = vmax.f32 %v1538, 0.0
  %v1571 = vmax.f32 %v1539, 0.0
  %v1572 = vmax.f32 %v1540, 0.0
  %v1573 = vmax.f32 %v1541, 0.0
  %v1574 = vmax.f32 %v1542, 0.0
  %v1575 = vmax.f32 %v1543, 0.0
  %v1576 = vmax.f32 %v1544, 0.0
  %v1577 = vmax.f32 %v1545, 0.0
  %v1578 = vmax.f32 %v1546, 0.0
  %v1579 = vmax.f32 %v1547, 0.0
  %v1580 = vmax.f32 %v1548, 0.0
  %v1581 = vmax.f32 %v1549, 0.0
  %v1582 = vmax.f32 %v1550, 0.0
  %v1583 = vmax.f32 %v1551, 0.0
  %v1584 = vmax.f32 %v1552, 0.0
  %v1585 = vmax.f32 %v1553, 0.0
  %v1586 = vmax.f32 %v1554, 0.0
  %v1587 = vmax.f32 %v1555, 0.0
  %v1588 = vmax.f32 %v1556, 0.0
  %v1589 = vmax.f32 %v1557, 0.0
  %v1590 = vmax.f32 %v1558, 0.0
  %v1591 = vmax.f32 %v1559, 0.0
  %v1592 = vmax.f32 %v1560, 0.0
  %v1593 = vmax.f32 %v1561, 0.0
  %v1594 = vmax.f32 %v1562, 0.0
  %v1595 = vmax.f32 %v1563, 0.0
  %v1596 = vsub.f32 %v1197, %v1436
  %v1597 = vsub.f32 %v1199, %v1437
  %v1598 = vsub.f32 %v1202, %v1438
  %v1599 = vsub.f32 %v1204, %v1439
  %v1600 = vsub.f32 %v1207, %v1440
  %v1601 = vsub.f32 %v1209, %v1441
  %v1602 = vsub.f32 %v1212, %v1442
  %v1603 = vsub.f32 %v1214, %v1443
  %v1604 = vsub.f32 %v1217, %v1444
  %v1605 = vsub.f32 %v1219, %v1445
  %v1606 = vsub.f32 %v1222, %v1446
  %v1607 = vsub.f32 %v1224, %v1447
  %v1608 = vsub.f32 %v1227, %v1448
  %v1609 = vsub.f32 %v1229, %v1449
  %v1610 = vsub.f32 %v1232, %v1450
  %v1611 = vsub.f32 %v1234, %v1451
  %v1612 = vsub.f32 %v1237, %v1452
  %v1613 = vsub.f32 %v1239, %v1453
  %v1614 = vsub.f32 %v1242, %v1454
  %v1615 = vsub.f32 %v1244, %v1455
  %v1616 = vsub.f32 %v1247, %v1456
  %v1617 = vsub.f32 %v1249, %v1457
  %v1618 = vsub.f32 %v1252, %v1458
  %v1619 = vsub.f32 %v1254, %v1459
  %v1620 = vsub.f32 %v1257, %v1460
  %v1621 = vsub.f32 %v1259, %v1461
  %v1622 = vsub.f32 %v1262, %v1462
  %v1623 = vsub.f32 %v1264, %v1463
  %v1624 = vsub.f32 %v1267, %v1464
  %v1625 = vsub.f32 %v1269, %v1465
  %v1626 = vsub.f32 %v1272, %v1466
  %v1627 = vsub.f32 %v1274, %v1467
  %v1628 = vadd.f32 %v1564, 1e-05
  %v1629 = vadd.f32 %v1565, 1e-05
  %v1630 = vadd.f32 %v1566, 1e-05
  %v1631 = vadd.f32 %v1567, 1e-05
  %v1632 = vadd.f32 %v1568, 1e-05
  %v1633 = vadd.f32 %v1569, 1e-05
  %v1634 = vadd.f32 %v1570, 1e-05
  %v1635 = vadd.f32 %v1571, 1e-05
  %v1636 = vadd.f32 %v1572, 1e-05
  %v1637 = vadd.f32 %v1573, 1e-05
  %v1638 = vadd.f32 %v1574, 1e-05
  %v1639 = vadd.f32 %v1575, 1e-05
  %v1640 = vadd.f32 %v1576, 1e-05
  %v1641 = vadd.f32 %v1577, 1e-05
  %v1642 = vadd.f32 %v1578, 1e-05
  %v1643 = vadd.f32 %v1579, 1e-05
  %v1644 = vadd.f32 %v1580, 1e-05
  %v1645 = vadd.f32 %v1581, 1e-05
  %v1646 = vadd.f32 %v1582, 1e-05
  %v1647 = vadd.f32 %v1583, 1e-05
  %v1648 = vadd.f32 %v1584, 1e-05
  %v1649 = vadd.f32 %v1585, 1e-05
  %v1650 = vadd.f32 %v1586, 1e-05
  %v1651 = vadd.f32 %v1587, 1e-05
  %v1652 = vadd.f32 %v1588, 1e-05
  %v1653 = vadd.f32 %v1589, 1e-05
  %v1654 = vadd.f32 %v1590, 1e-05
  %v1655 = vadd.f32 %v1591, 1e-05
  %v1656 = vadd.f32 %v1592, 1e-05
  %v1657 = vadd.f32 %v1593, 1e-05
  %v1658 = vadd.f32 %v1594, 1e-05
  %v1659 = vadd.f32 %v1595, 1e-05
  %v1660 = vrsqrt.pop %v1628
  %v1661 = vmul.f32 %v1660, %v1628
  %v1662 = vmul.f32 %v1661, %v1660
  %v1663 = vmul.f32 0.5, %v1662
  %v1664 = vsub.f32 1.5, %v1663
  %v1665 = vmul.f32 %v1660, %v1664
  %vm1666 = vweird.f32 %v1628
  %vm1667 = vweird.f32 %v1660
  %vm1668 = vmor %vm1666, %vm1667
  %v1669 = vsel %vm1668, %v1660, %v1665
  %v1670 = vrsqrt.pop %v1629
  %v1671 = vmul.f32 %v1670, %v1629
  %v1672 = vmul.f32 %v1671, %v1670
  %v1673 = vmul.f32 0.5, %v1672
  %v1674 = vsub.f32 1.5, %v1673
  %v1675 = vmul.f32 %v1670, %v1674
  %vm1676 = vweird.f32 %v1629
  %vm1677 = vweird.f32 %v1670
  %vm1678 = vmor %vm1676, %vm1677
  %v1679 = vsel %vm1678, %v1670, %v1675
  %v1680 = vrsqrt.pop %v1630
  %v1681 = vmul.f32 %v1680, %v1630
  %v1682 = vmul.f32 %v1681, %v1680
  %v1683 = vmul.f32 0.5, %v1682
  %v1684 = vsub.f32 1.5, %v1683
  %v1685 = vmul.f32 %v1680, %v1684
  %vm1686 = vweird.f32 %v1630
  %vm1687 = vweird.f32 %v1680
  %vm1688 = vmor %vm1686, %vm1687
  %v1689 = vsel %vm1688, %v1680, %v1685
  %v1690 = vrsqrt.pop %v1631
  %v1691 = vmul.f32 %v1690, %v1631
  %v1692 = vmul.f32 %v1691, %v1690
  %v1693 = vmul.f32 0.5, %v1692
  %v1694 = vsub.f32 1.5, %v1693
  %v1695 = vmul.f32 %v1690, %v1694
  %vm1696 = vweird.f32 %v1631
  %vm1697 = vweird.f32 %v1690
  %vm1698 = vmor %vm1696, %vm1697
  %v1699 = vsel %vm1698, %v1690, %v1695
  %v1700 = vrsqrt.pop %v1632
  %v1701 = vmul.f32 %v1700, %v1632
  %v1702 = vmul.f32 %v1701, %v1700
  %v1703 = vmul.f32 0.5, %v1702
  %v1704 = vsub.f32 1.5, %v1703
  %v1705 = vmul.f32 %v1700, %v1704
  %vm1706 = vweird.f32 %v1632
  %vm1707 = vweird.f32 %v1700
  %vm1708 = vmor %vm1706, %vm1707
  %v1709 = vsel %vm1708, %v1700, %v1705
  %v1710 = vrsqrt.pop %v1633
  %v1711 = vmul.f32 %v1710, %v1633
  %v1712 = vmul.f32 %v1711, %v1710
  %v1713 = vmul.f32 0.5, %v1712
  %v1714 = vsub.f32 1.5, %v1713
  %v1715 = vmul.f32 %v1710, %v1714
  %vm1716 = vweird.f32 %v1633
  %vm1717 = vweird.f32 %v1710
  %vm1718 = vmor %vm1716, %vm1717
  %v1719 = vsel %vm1718, %v1710, %v1715
  %v1720 = vrsqrt.pop %v1634
  %v1721 = vmul.f32 %v1720, %v1634
  %v1722 = vmul.f32 %v1721, %v1720
  %v1723 = vmul.f32 0.5, %v1722
  %v1724 = vsub.f32 1.5, %v1723
  %v1725 = vmul.f32 %v1720, %v1724
  %vm1726 = vweird.f32 %v1634
  %vm1727 = vweird.f32 %v1720
  %vm1728 = vmor %vm1726, %vm1727
  %v1729 = vsel %vm1728, %v1720, %v1725
  %v1730 = vrsqrt.pop %v1635
  %v1731 = vmul.f32 %v1730, %v1635
  %v1732 = vmul.f32 %v1731, %v1730
  %v1733 = vmul.f32 0.5, %v1732
  %v1734 = vsub.f32 1.5, %v1733
  %v1735 = vmul.f32 %v1730, %v1734
  %vm1736 = vweird.f32 %v1635
  %vm1737 = vweird.f32 %v1730
  %vm1738 = vmor %vm1736, %vm1737
  %v1739 = vsel %vm1738, %v1730, %v1735
  %v1740 = vrsqrt.pop %v1636
  %v1741 = vmul.f32 %v1740, %v1636
  %v1742 = vmul.f32 %v1741, %v1740
  %v1743 = vmul.f32 0.5, %v1742
  %v1744 = vsub.f32 1.5, %v1743
  %v1745 = vmul.f32 %v1740, %v1744
  %vm1746 = vweird.f32 %v1636
  %vm1747 = vweird.f32 %v1740
  %vm1748 = vmor %vm1746, %vm1747
  %v1749 = vsel %vm1748, %v1740, %v1745
  %v1750 = vrsqrt.pop %v1637
  %v1751 = vmul.f32 %v1750, %v1637
  %v1752 = vmul.f32 %v1751, %v1750
  %v1753 = vmul.f32 0.5, %v1752
  %v1754 = vsub.f32 1.5, %v1753
  %v1755 = vmul.f32 %v1750, %v1754
  %vm1756 = vweird.f32 %v1637
  %vm1757 = vweird.f32 %v1750
  %vm1758 = vmor %vm1756, %vm1757
  %v1759 = vsel %vm1758, %v1750, %v1755
  %v1760 = vrsqrt.pop %v1638
  %v1761 = vmul.f32 %v1760, %v1638
  %v1762 = vmul.f32 %v1761, %v1760
  %v1763 = vmul.f32 0.5, %v1762
  %v1764 = vsub.f32 1.5, %v1763
  %v1765 = vmul.f32 %v1760, %v1764
  %vm1766 = vweird.f32 %v1638
  %vm1767 = vweird.f32 %v1760
  %vm1768 = vmor %vm1766, %vm1767
  %v1769 = vsel %vm1768, %v1760, %v1765
  %v1770 = vrsqrt.pop %v1639
  %v1771 = vmul.f32 %v1770, %v1639
  %v1772 = vmul.f32 %v1771, %v1770
  %v1773 = vmul.f32 0.5, %v1772
  %v1774 = vsub.f32 1.5, %v1773
  %v1775 = vmul.f32 %v1770, %v1774
  %vm1776 = vweird.f32 %v1639
  %vm1777 = vweird.f32 %v1770
  %vm1778 = vmor %vm1776, %vm1777
  %v1779 = vsel %vm1778, %v1770, %v1775
  %v1780 = vrsqrt.pop %v1640
  %v1781 = vmul.f32 %v1780, %v1640
  %v1782 = vmul.f32 %v1781, %v1780
  %v1783 = vmul.f32 0.5, %v1782
  %v1784 = vsub.f32 1.5, %v1783
  %v1785 = vmul.f32 %v1780, %v1784
  %vm1786 = vweird.f32 %v1640
  %vm1787 = vweird.f32 %v1780
  %vm1788 = vmor %vm1786, %vm1787
  %v1789 = vsel %vm1788, %v1780, %v1785
  %v1790 = vrsqrt.pop %v1641
  %v1791 = vmul.f32 %v1790, %v1641
  %v1792 = vmul.f32 %v1791, %v1790
  %v1793 = vmul.f32 0.5, %v1792
  %v1794 = vsub.f32 1.5, %v1793
  %v1795 = vmul.f32 %v1790, %v1794
  %vm1796 = vweird.f32 %v1641
  %vm1797 = vweird.f32 %v1790
  %vm1798 = vmor %vm1796, %vm1797
  %v1799 = vsel %vm1798, %v1790, %v1795
  %v1800 = vrsqrt.pop %v1642
  %v1801 = vmul.f32 %v1800, %v1642
  %v1802 = vmul.f32 %v1801, %v1800
  %v1803 = vmul.f32 0.5, %v1802
  %v1804 = vsub.f32 1.5, %v1803
  %v1805 = vmul.f32 %v1800, %v1804
  %vm1806 = vweird.f32 %v1642
  %vm1807 = vweird.f32 %v1800
  %vm1808 = vmor %vm1806, %vm1807
  %v1809 = vsel %vm1808, %v1800, %v1805
  %v1810 = vrsqrt.pop %v1643
  %v1811 = vmul.f32 %v1810, %v1643
  %v1812 = vmul.f32 %v1811, %v1810
  %v1813 = vmul.f32 0.5, %v1812
  %v1814 = vsub.f32 1.5, %v1813
  %v1815 = vmul.f32 %v1810, %v1814
  %vm1816 = vweird.f32 %v1643
  %vm1817 = vweird.f32 %v1810
  %vm1818 = vmor %vm1816, %vm1817
  %v1819 = vsel %vm1818, %v1810, %v1815
  %v1820 = vrsqrt.pop %v1644
  %v1821 = vmul.f32 %v1820, %v1644
  %v1822 = vmul.f32 %v1821, %v1820
  %v1823 = vmul.f32 0.5, %v1822
  %v1824 = vsub.f32 1.5, %v1823
  %v1825 = vmul.f32 %v1820, %v1824
  %vm1826 = vweird.f32 %v1644
  %vm1827 = vweird.f32 %v1820
  %vm1828 = vmor %vm1826, %vm1827
  %v1829 = vsel %vm1828, %v1820, %v1825
  %v1830 = vrsqrt.pop %v1645
  %v1831 = vmul.f32 %v1830, %v1645
  %v1832 = vmul.f32 %v1831, %v1830
  %v1833 = vmul.f32 0.5, %v1832
  %v1834 = vsub.f32 1.5, %v1833
  %v1835 = vmul.f32 %v1830, %v1834
  %vm1836 = vweird.f32 %v1645
  %vm1837 = vweird.f32 %v1830
  %vm1838 = vmor %vm1836, %vm1837
  %v1839 = vsel %vm1838, %v1830, %v1835
  %v1840 = vrsqrt.pop %v1646
  %v1841 = vmul.f32 %v1840, %v1646
  %v1842 = vmul.f32 %v1841, %v1840
  %v1843 = vmul.f32 0.5, %v1842
  %v1844 = vsub.f32 1.5, %v1843
  %v1845 = vmul.f32 %v1840, %v1844
  %vm1846 = vweird.f32 %v1646
  %vm1847 = vweird.f32 %v1840
  %vm1848 = vmor %vm1846, %vm1847
  %v1849 = vsel %vm1848, %v1840, %v1845
  %v1850 = vrsqrt.pop %v1647
  %v1851 = vmul.f32 %v1850, %v1647
  %v1852 = vmul.f32 %v1851, %v1850
  %v1853 = vmul.f32 0.5, %v1852
  %v1854 = vsub.f32 1.5, %v1853
  %v1855 = vmul.f32 %v1850, %v1854
  %vm1856 = vweird.f32 %v1647
  %vm1857 = vweird.f32 %v1850
  %vm1858 = vmor %vm1856, %vm1857
  %v1859 = vsel %vm1858, %v1850, %v1855
  %v1860 = vrsqrt.pop %v1648
  %v1861 = vmul.f32 %v1860, %v1648
  %v1862 = vmul.f32 %v1861, %v1860
  %v1863 = vmul.f32 0.5, %v1862
  %v1864 = vsub.f32 1.5, %v1863
  %v1865 = vmul.f32 %v1860, %v1864
  %vm1866 = vweird.f32 %v1648
  %vm1867 = vweird.f32 %v1860
  %vm1868 = vmor %vm1866, %vm1867
  %v1869 = vsel %vm1868, %v1860, %v1865
  %v1870 = vrsqrt.pop %v1649
  %v1871 = vmul.f32 %v1870, %v1649
  %v1872 = vmul.f32 %v1871, %v1870
  %v1873 = vmul.f32 0.5, %v1872
  %v1874 = vsub.f32 1.5, %v1873
  %v1875 = vmul.f32 %v1870, %v1874
  %vm1876 = vweird.f32 %v1649
  %vm1877 = vweird.f32 %v1870
  %vm1878 = vmor %vm1876, %vm1877
  %v1879 = vsel %vm1878, %v1870, %v1875
  %v1880 = vrsqrt.pop %v1650
  %v1881 = vmul.f32 %v1880, %v1650
  %v1882 = vmul.f32 %v1881, %v1880
  %v1883 = vmul.f32 0.5, %v1882
  %v1884 = vsub.f32 1.5, %v1883
  %v1885 = vmul.f32 %v1880, %v1884
  %vm1886 = vweird.f32 %v1650
  %vm1887 = vweird.f32 %v1880
  %vm1888 = vmor %vm1886, %vm1887
  %v1889 = vsel %vm1888, %v1880, %v1885
  %v1890 = vrsqrt.pop %v1651
  %v1891 = vmul.f32 %v1890, %v1651
  %v1892 = vmul.f32 %v1891, %v1890
  %v1893 = vmul.f32 0.5, %v1892
  %v1894 = vsub.f32 1.5, %v1893
  %v1895 = vmul.f32 %v1890, %v1894
  %vm1896 = vweird.f32 %v1651
  %vm1897 = vweird.f32 %v1890
  %vm1898 = vmor %vm1896, %vm1897
  %v1899 = vsel %vm1898, %v1890, %v1895
  %v1900 = vrsqrt.pop %v1652
  %v1901 = vmul.f32 %v1900, %v1652
  %v1902 = vmul.f32 %v1901, %v1900
  %v1903 = vmul.f32 0.5, %v1902
  %v1904 = vsub.f32 1.5, %v1903
  %v1905 = vmul.f32 %v1900, %v1904
  %vm1906 = vweird.f32 %v1652
  %vm1907 = vweird.f32 %v1900
  %vm1908 = vmor %vm1906, %vm1907
  %v1909 = vsel %vm1908, %v1900, %v1905
  %v1910 = vrsqrt.pop %v1653
  %v1911 = vmul.f32 %v1910, %v1653
  %v1912 = vmul.f32 %v1911, %v1910
  %v1913 = vmul.f32 0.5, %v1912
  %v1914 = vsub.f32 1.5, %v1913
  %v1915 = vmul.f32 %v1910, %v1914
  %vm1916 = vweird.f32 %v1653
  %vm1917 = vweird.f32 %v1910
  %vm1918 = vmor %vm1916, %vm1917
  %v1919 = vsel %vm1918, %v1910, %v1915
  %v1920 = vrsqrt.pop %v1654
  %v1921 = vmul.f32 %v1920, %v1654
  %v1922 = vmul.f32 %v1921, %v1920
  %v1923 = vmul.f32 0.5, %v1922
  %v1924 = vsub.f32 1.5, %v1923
  %v1925 = vmul.f32 %v1920, %v1924
  %vm1926 = vweird.f32 %v1654
  %vm1927 = vweird.f32 %v1920
  %vm1928 = vmor %vm1926, %vm1927
  %v1929 = vsel %vm1928, %v1920, %v1925
  %v1930 = vrsqrt.pop %v1655
  %v1931 = vmul.f32 %v1930, %v1655
  %v1932 = vmul.f32 %v1931, %v1930
  %v1933 = vmul.f32 0.5, %v1932
  %v1934 = vsub.f32 1.5, %v1933
  %v1935 = vmul.f32 %v1930, %v1934
  %vm1936 = vweird.f32 %v1655
  %vm1937 = vweird.f32 %v1930
  %vm1938 = vmor %vm1936, %vm1937
  %v1939 = vsel %vm1938, %v1930, %v1935
  %v1940 = vrsqrt.pop %v1656
  %v1941 = vmul.f32 %v1940, %v1656
  %v1942 = vmul.f32 %v1941, %v1940
  %v1943 = vmul.f32 0.5, %v1942
  %v1944 = vsub.f32 1.5, %v1943
  %v1945 = vmul.f32 %v1940, %v1944
  %vm1946 = vweird.f32 %v1656
  %vm1947 = vweird.f32 %v1940
  %vm1948 = vmor %vm1946, %vm1947
  %v1949 = vsel %vm1948, %v1940, %v1945
  %v1950 = vrsqrt.pop %v1657
  %v1951 = vmul.f32 %v1950, %v1657
  %v1952 = vmul.f32 %v1951, %v1950
  %v1953 = vmul.f32 0.5, %v1952
  %v1954 = vsub.f32 1.5, %v1953
  %v1955 = vmul.f32 %v1950, %v1954
  %vm1956 = vweird.f32 %v1657
  %vm1957 = vweird.f32 %v1950
  %vm1958 = vmor %vm1956, %vm1957
  %v1959 = vsel %vm1958, %v1950, %v1955
  %v1960 = vrsqrt.pop %v1658
  %v1961 = vmul.f32 %v1960, %v1658
  %v1962 = vmul.f32 %v1961, %v1960
  %v1963 = vmul.f32 0.5, %v1962
  %v1964 = vsub.f32 1.5, %v1963
  %v1965 = vmul.f32 %v1960, %v1964
  %vm1966 = vweird.f32 %v1658
  %vm1967 = vweird.f32 %v1960
  %vm1968 = vmor %vm1966, %vm1967
  %v1969 = vsel %vm1968, %v1960, %v1965
  %v1970 = vrsqrt.pop %v1659
  %v1971 = vmul.f32 %v1970, %v1659
  %v1972 = vmul.f32 %v1971, %v1970
  %v1973 = vmul.f32 0.5, %v1972
  %v1974 = vsub.f32 1.5, %v1973
  %v1975 = vmul.f32 %v1970, %v1974
  %vm1976 = vweird.f32 %v1659
  %vm1977 = vweird.f32 %v1970
  %vm1978 = vmor %vm1976, %vm1977
  %v1979 = vsel %vm1978, %v1970, %v1975
  %v1980 = vmul.f32 %v1596, %v1669
  %v1981 = vmul.f32 %v1597, %v1679
  %v1982 = vmul.f32 %v1598, %v1689
  %v1983 = vmul.f32 %v1599, %v1699
  %v1984 = vmul.f32 %v1600, %v1709
  %v1985 = vmul.f32 %v1601, %v1719
  %v1986 = vmul.f32 %v1602, %v1729
  %v1987 = vmul.f32 %v1603, %v1739
  %v1988 = vmul.f32 %v1604, %v1749
  %v1989 = vmul.f32 %v1605, %v1759
  %v1990 = vmul.f32 %v1606, %v1769
  %v1991 = vmul.f32 %v1607, %v1779
  %v1992 = vmul.f32 %v1608, %v1789
  %v1993 = vmul.f32 %v1609, %v1799
  %v1994 = vmul.f32 %v1610, %v1809
  %v1995 = vmul.f32 %v1611, %v1819
  %v1996 = vmul.f32 %v1612, %v1829
  %v1997 = vmul.f32 %v1613, %v1839
  %v1998 = vmul.f32 %v1614, %v1849
  %v1999 = vmul.f32 %v1615, %v1859
  %v2000 = vmul.f32 %v1616, %v1869
  %v2001 = vmul.f32 %v1617, %v1879
  %v2002 = vmul.f32 %v1618, %v1889
  %v2003 = vmul.f32 %v1619, %v1899
  %v2004 = vmul.f32 %v1620, %v1909
  %v2005 = vmul.f32 %v1621, %v1919
  %v2006 = vmul.f32 %v1622, %v1929
  %v2007 = vmul.f32 %v1623, %v1939
  %v2008 = vmul.f32 %v1624, %v1949
  %v2009 = vmul.f32 %v1625, %v1959
  %v2010 = vmul.f32 %v1626, %v1969
  %v2011 = vmul.f32 %v1627, %v1979
  %v2013 = vperm.slane %v1134, 0
  %v2015 = vmul.f32 %v1980, %v2013
  %v2016 = vmul.f32 %v1981, %v2013
  %v2017 = vmul.f32 %v1982, %v2013
  %v2018 = vmul.f32 %v1983, %v2013
  %v2019 = vmul.f32 %v1984, %v2013
  %v2020 = vmul.f32 %v1985, %v2013
  %v2021 = vmul.f32 %v1986, %v2013
  %v2022 = vmul.f32 %v1987, %v2013
  %v2023 = vmul.f32 %v1988, %v2013
  %v2024 = vmul.f32 %v1989, %v2013
  %v2025 = vmul.f32 %v1990, %v2013
  %v2026 = vmul.f32 %v1991, %v2013
  %v2027 = vmul.f32 %v1992, %v2013
  %v2028 = vmul.f32 %v1993, %v2013
  %v2029 = vmul.f32 %v1994, %v2013
  %v2030 = vmul.f32 %v1995, %v2013
  %v2031 = vmul.f32 %v1996, %v2013
  %v2032 = vmul.f32 %v1997, %v2013
  %v2033 = vmul.f32 %v1998, %v2013
  %v2034 = vmul.f32 %v1999, %v2013
  %v2035 = vmul.f32 %v2000, %v2013
  %v2036 = vmul.f32 %v2001, %v2013
  %v2037 = vmul.f32 %v2002, %v2013
  %v2038 = vmul.f32 %v2003, %v2013
  %v2039 = vmul.f32 %v2004, %v2013
  %v2040 = vmul.f32 %v2005, %v2013
  %v2041 = vmul.f32 %v2006, %v2013
  %v2042 = vmul.f32 %v2007, %v2013
  %v2043 = vmul.f32 %v2008, %v2013
  %v2044 = vmul.f32 %v2009, %v2013
  %v2045 = vmul.f32 %v2010, %v2013
  %v2046 = vmul.f32 %v2011, %v2013
  %v2048 = vperm.slane %v1135, 0
  %v2050 = vadd.f32 %v2015, %v2048
  %v2051 = vadd.f32 %v2016, %v2048
  %v2052 = vadd.f32 %v2017, %v2048
  %v2053 = vadd.f32 %v2018, %v2048
  %v2054 = vadd.f32 %v2019, %v2048
  %v2055 = vadd.f32 %v2020, %v2048
  %v2056 = vadd.f32 %v2021, %v2048
  %v2057 = vadd.f32 %v2022, %v2048
  %v2058 = vadd.f32 %v2023, %v2048
  %v2059 = vadd.f32 %v2024, %v2048
  %v2060 = vadd.f32 %v2025, %v2048
  %v2061 = vadd.f32 %v2026, %v2048
  %v2062 = vadd.f32 %v2027, %v2048
  %v2063 = vadd.f32 %v2028, %v2048
  %v2064 = vadd.f32 %v2029, %v2048
  %v2065 = vadd.f32 %v2030, %v2048
  %v2066 = vadd.f32 %v2031, %v2048
  %v2067 = vadd.f32 %v2032, %v2048
  %v2068 = vadd.f32 %v2033, %v2048
  %v2069 = vadd.f32 %v2034, %v2048
  %v2070 = vadd.f32 %v2035, %v2048
  %v2071 = vadd.f32 %v2036, %v2048
  %v2072 = vadd.f32 %v2037, %v2048
  %v2073 = vadd.f32 %v2038, %v2048
  %v2074 = vadd.f32 %v2039, %v2048
  %v2075 = vadd.f32 %v2040, %v2048
  %v2076 = vadd.f32 %v2041, %v2048
  %v2077 = vadd.f32 %v2042, %v2048
  %v2078 = vadd.f32 %v2043, %v2048
  %v2079 = vadd.f32 %v2044, %v2048
  %v2080 = vadd.f32 %v2045, %v2048
  %v2081 = vadd.f32 %v2046, %v2048
  %v2082 = vmax.f32 %v2050, 0.0
  %v2083 = vmax.f32 %v2051, 0.0
  %v2084 = vmax.f32 %v2052, 0.0
  %v2085 = vmax.f32 %v2053, 0.0
  %v2086 = vmax.f32 %v2054, 0.0
  %v2087 = vmax.f32 %v2055, 0.0
  %v2088 = vmax.f32 %v2056, 0.0
  %v2089 = vmax.f32 %v2057, 0.0
  %v2090 = vmax.f32 %v2058, 0.0
  %v2091 = vmax.f32 %v2059, 0.0
  %v2092 = vmax.f32 %v2060, 0.0
  %v2093 = vmax.f32 %v2061, 0.0
  %v2094 = vmax.f32 %v2062, 0.0
  %v2095 = vmax.f32 %v2063, 0.0
  %v2096 = vmax.f32 %v2064, 0.0
  %v2097 = vmax.f32 %v2065, 0.0
  %v2098 = vmax.f32 %v2066, 0.0
  %v2099 = vmax.f32 %v2067, 0.0
  %v2100 = vmax.f32 %v2068, 0.0
  %v2101 = vmax.f32 %v2069, 0.0
  %v2102 = vmax.f32 %v2070, 0.0
  %v2103 = vmax.f32 %v2071, 0.0
  %v2104 = vmax.f32 %v2072, 0.0
  %v2105 = vmax.f32 %v2073, 0.0
  %v2106 = vmax.f32 %v2074, 0.0
  %v2107 = vmax.f32 %v2075, 0.0
  %v2108 = vmax.f32 %v2076, 0.0
  %v2109 = vmax.f32 %v2077, 0.0
  %v2110 = vmax.f32 %v2078, 0.0
  %v2111 = vmax.f32 %v2079, 0.0
  %v2112 = vmax.f32 %v2080, 0.0
  %v2113 = vmax.f32 %v2081, 0.0
  %v2114 = vpack.c.bf16 %v2083, %v2082
  %v2115 = vpack.c.bf16 %v2085, %v2084
  %v2116 = vpack.c.bf16 %v2087, %v2086
  %v2117 = vpack.c.bf16 %v2089, %v2088
  %v2118 = vpack.c.bf16 %v2091, %v2090
  %v2119 = vpack.c.bf16 %v2093, %v2092
  %v2120 = vpack.c.bf16 %v2095, %v2094
  %v2121 = vpack.c.bf16 %v2097, %v2096
  %v2122 = vpack.c.bf16 %v2099, %v2098
  %v2123 = vpack.c.bf16 %v2101, %v2100
  %v2124 = vpack.c.bf16 %v2103, %v2102
  %v2125 = vpack.c.bf16 %v2105, %v2104
  %v2126 = vpack.c.bf16 %v2107, %v2106
  %v2127 = vpack.c.bf16 %v2109, %v2108
  %v2128 = vpack.c.bf16 %v2111, %v2110
  %v2129 = vpack.c.bf16 %v2113, %v2112
  %v2130 = vld [vmem:[%s9] sm:$0xf]
  %v2131 = vld [vmem:[%s9 + $0x4] sm:$0xf]
  %v2132 = vld [vmem:[%s9 + $0x8] sm:$0xf]
  %v2133 = vld [vmem:[%s9 + $0xc] sm:$0xf]
  %v2134 = vld [vmem:[%s9 + $0x10] sm:$0xf]
  %v2135 = vld [vmem:[%s9 + $0x14] sm:$0xf]
  %v2136 = vld [vmem:[%s9 + $0x18] sm:$0xf]
  %v2137 = vld [vmem:[%s9 + $0x1c] sm:$0xf]
  %v2138 = vld [vmem:[%s9 + $0x20] sm:$0xf]
  %v2139 = vld [vmem:[%s9 + $0x24] sm:$0xf]
  %v2140 = vld [vmem:[%s9 + $0x28] sm:$0xf]
  %v2141 = vld [vmem:[%s9 + $0x2c] sm:$0xf]
  %v2142 = vld [vmem:[%s9 + $0x30] sm:$0xf]
  %v2143 = vld [vmem:[%s9 + $0x34] sm:$0xf]
  %v2144 = vld [vmem:[%s9 + $0x38] sm:$0xf]
  %v2145 = vld [vmem:[%s9 + $0x3c] sm:$0xf]
  %v2146 = vld [vmem:[%s10] sm:$0x1]
  %v2148 = vperm.slane %v2146, 0
  %v2166 = vunpack.c.l.b16 %v2130
  %v2167 = vunpack.c.l.b16 %v2131
  %v2168 = vunpack.c.l.b16 %v2132
  %v2169 = vunpack.c.l.b16 %v2133
  %v2170 = vunpack.c.l.b16 %v2134
  %v2171 = vunpack.c.l.b16 %v2135
  %v2172 = vunpack.c.l.b16 %v2136
  %v2173 = vunpack.c.l.b16 %v2137
  %v2174 = vunpack.c.l.b16 %v2138
  %v2175 = vunpack.c.l.b16 %v2139
  %v2176 = vunpack.c.l.b16 %v2140
  %v2177 = vunpack.c.l.b16 %v2141
  %v2178 = vunpack.c.l.b16 %v2142
  %v2179 = vunpack.c.l.b16 %v2143
  %v2180 = vunpack.c.l.b16 %v2144
  %v2181 = vunpack.c.l.b16 %v2145
  %v2182 = vpack.c.b16 %v2167, %v2166
  %v2183 = vpack.c.b16 %v2169, %v2168
  %v2184 = vpack.c.b16 %v2171, %v2170
  %v2185 = vpack.c.b16 %v2173, %v2172
  %v2186 = vpack.c.b16 %v2175, %v2174
  %v2187 = vpack.c.b16 %v2177, %v2176
  %v2188 = vpack.c.b16 %v2179, %v2178
  %v2189 = vpack.c.b16 %v2181, %v2180
  %2198 = vmatpush.bf16.msra.mxu0 %v2189
  %2199 = vmatpush.bf16.msra.mxu0 %v2188
  %2200 = vmatpush.bf16.msra.mxu0 %v2187
  %2201 = vmatpush.bf16.msra.mxu0 %v2186
  %2202 = vmatpush.bf16.msra.mxu0 %v2185
  %2203 = vmatpush.bf16.msra.mxu0 %v2184
  %2204 = vmatpush.bf16.msra.mxu0 %v2183
  %2205 = vmatpush.bf16.msra.mxu0 %v2182
  %2206 = vmatmul.bf16.gmra.mxu0 %v2114
  %v2207 = vpop.f32.mrf.mxu0
  %v2208 = vadd.f32 %v2148, %v2207
  %v2209 = vpop.f32.mrf.mxu0
  %v2210 = vadd.f32 %v2148, %v2209
  %2211 = vmatmul.bf16.gmra.mxu0 %v2115
  %v2212 = vpop.f32.mrf.mxu0
  %v2213 = vadd.f32 %v2148, %v2212
  %v2214 = vpop.f32.mrf.mxu0
  %v2215 = vadd.f32 %v2148, %v2214
  %2216 = vmatmul.bf16.gmra.mxu0 %v2116
  %v2217 = vpop.f32.mrf.mxu0
  %v2218 = vadd.f32 %v2148, %v2217
  %v2219 = vpop.f32.mrf.mxu0
  %v2220 = vadd.f32 %v2148, %v2219
  %2221 = vmatmul.bf16.gmra.mxu0 %v2117
  %v2222 = vpop.f32.mrf.mxu0
  %v2223 = vadd.f32 %v2148, %v2222
  %v2224 = vpop.f32.mrf.mxu0
  %v2225 = vadd.f32 %v2148, %v2224
  %2226 = vmatmul.bf16.gmra.mxu0 %v2118
  %v2227 = vpop.f32.mrf.mxu0
  %v2228 = vadd.f32 %v2148, %v2227
  %v2229 = vpop.f32.mrf.mxu0
  %v2230 = vadd.f32 %v2148, %v2229
  %2231 = vmatmul.bf16.gmra.mxu0 %v2119
  %v2232 = vpop.f32.mrf.mxu0
  %v2233 = vadd.f32 %v2148, %v2232
  %v2234 = vpop.f32.mrf.mxu0
  %v2235 = vadd.f32 %v2148, %v2234
  %2236 = vmatmul.bf16.gmra.mxu0 %v2120
  %v2237 = vpop.f32.mrf.mxu0
  %v2238 = vadd.f32 %v2148, %v2237
  %v2239 = vpop.f32.mrf.mxu0
  %v2240 = vadd.f32 %v2148, %v2239
  %2241 = vmatmul.bf16.gmra.mxu0 %v2121
  %v2242 = vpop.f32.mrf.mxu0
  %v2243 = vadd.f32 %v2148, %v2242
  %v2244 = vpop.f32.mrf.mxu0
  %v2245 = vadd.f32 %v2148, %v2244
  %2246 = vmatmul.bf16.gmra.mxu0 %v2122
  %v2247 = vpop.f32.mrf.mxu0
  %v2248 = vadd.f32 %v2148, %v2247
  %v2249 = vpop.f32.mrf.mxu0
  %v2250 = vadd.f32 %v2148, %v2249
  %2251 = vmatmul.bf16.gmra.mxu0 %v2123
  %v2252 = vpop.f32.mrf.mxu0
  %v2253 = vadd.f32 %v2148, %v2252
  %v2254 = vpop.f32.mrf.mxu0
  %v2255 = vadd.f32 %v2148, %v2254
  %2256 = vmatmul.bf16.gmra.mxu0 %v2124
  %v2257 = vpop.f32.mrf.mxu0
  %v2258 = vadd.f32 %v2148, %v2257
  %v2259 = vpop.f32.mrf.mxu0
  %v2260 = vadd.f32 %v2148, %v2259
  %2261 = vmatmul.bf16.gmra.mxu0 %v2125
  %v2262 = vpop.f32.mrf.mxu0
  %v2263 = vadd.f32 %v2148, %v2262
  %v2264 = vpop.f32.mrf.mxu0
  %v2265 = vadd.f32 %v2148, %v2264
  %2266 = vmatmul.bf16.gmra.mxu0 %v2126
  %v2267 = vpop.f32.mrf.mxu0
  %v2268 = vadd.f32 %v2148, %v2267
  %v2269 = vpop.f32.mrf.mxu0
  %v2270 = vadd.f32 %v2148, %v2269
  %2271 = vmatmul.bf16.gmra.mxu0 %v2127
  %v2272 = vpop.f32.mrf.mxu0
  %v2273 = vadd.f32 %v2148, %v2272
  %v2274 = vpop.f32.mrf.mxu0
  %v2275 = vadd.f32 %v2148, %v2274
  %2276 = vmatmul.bf16.gmra.mxu0 %v2128
  %v2277 = vpop.f32.mrf.mxu0
  %v2278 = vadd.f32 %v2148, %v2277
  %v2279 = vpop.f32.mrf.mxu0
  %v2280 = vadd.f32 %v2148, %v2279
  %2281 = vmatmul.bf16.gmra.mxu0 %v2129
  %v2282 = vpop.f32.mrf.mxu0
  %v2283 = vadd.f32 %v2148, %v2282
  %v2284 = vpop.f32.mrf.mxu0
  %v2285 = vadd.f32 %v2148, %v2284
  %2286 = vdwg.mxu0
  %v2287 = vpack.c.bf16 %v2208, %v2208
  %v2288 = vpack.c.bf16 %v2210, %v2210
  %v2289 = vpack.c.bf16 %v2213, %v2213
  %v2290 = vpack.c.bf16 %v2215, %v2215
  %v2291 = vpack.c.bf16 %v2218, %v2218
  %v2292 = vpack.c.bf16 %v2220, %v2220
  %v2293 = vpack.c.bf16 %v2223, %v2223
  %v2294 = vpack.c.bf16 %v2225, %v2225
  %v2295 = vpack.c.bf16 %v2228, %v2228
  %v2296 = vpack.c.bf16 %v2230, %v2230
  %v2297 = vpack.c.bf16 %v2233, %v2233
  %v2298 = vpack.c.bf16 %v2235, %v2235
  %v2299 = vpack.c.bf16 %v2238, %v2238
  %v2300 = vpack.c.bf16 %v2240, %v2240
  %v2301 = vpack.c.bf16 %v2243, %v2243
  %v2302 = vpack.c.bf16 %v2245, %v2245
  %v2303 = vpack.c.bf16 %v2248, %v2248
  %v2304 = vpack.c.bf16 %v2250, %v2250
  %v2305 = vpack.c.bf16 %v2253, %v2253
  %v2306 = vpack.c.bf16 %v2255, %v2255
  %v2307 = vpack.c.bf16 %v2258, %v2258
  %v2308 = vpack.c.bf16 %v2260, %v2260
  %v2309 = vpack.c.bf16 %v2263, %v2263
  %v2310 = vpack.c.bf16 %v2265, %v2265
  %v2311 = vpack.c.bf16 %v2268, %v2268
  %v2312 = vpack.c.bf16 %v2270, %v2270
  %v2313 = vpack.c.bf16 %v2273, %v2273
  %v2314 = vpack.c.bf16 %v2275, %v2275
  %v2315 = vpack.c.bf16 %v2278, %v2278
  %v2316 = vpack.c.bf16 %v2280, %v2280
  %v2317 = vpack.c.bf16 %v2283, %v2283
  %v2318 = vpack.c.bf16 %v2285, %v2285
  %2319 = vst [vmem:[%s11] sm:$0xf] %v2287
  %2320 = vst [vmem:[%s11 + $0x4] sm:$0xf] %v2288
  %2321 = vst [vmem:[%s11 + $0x8] sm:$0xf] %v2289
  %2322 = vst [vmem:[%s11 + $0xc] sm:$0xf] %v2290
  %2323 = vst [vmem:[%s11 + $0x10] sm:$0xf] %v2291
  %2324 = vst [vmem:[%s11 + $0x14] sm:$0xf] %v2292
  %2325 = vst [vmem:[%s11 + $0x18] sm:$0xf] %v2293
  %2326 = vst [vmem:[%s11 + $0x1c] sm:$0xf] %v2294
  %2327 = vst [vmem:[%s11 + $0x20] sm:$0xf] %v2295
  %2328 = vst [vmem:[%s11 + $0x24] sm:$0xf] %v2296
  %2329 = vst [vmem:[%s11 + $0x28] sm:$0xf] %v2297
  %2330 = vst [vmem:[%s11 + $0x2c] sm:$0xf] %v2298
  %2331 = vst [vmem:[%s11 + $0x30] sm:$0xf] %v2299
  %2332 = vst [vmem:[%s11 + $0x34] sm:$0xf] %v2300
  %2333 = vst [vmem:[%s11 + $0x38] sm:$0xf] %v2301
  %2334 = vst [vmem:[%s11 + $0x3c] sm:$0xf] %v2302
  %2335 = vst [vmem:[%s11 + $0x40] sm:$0xf] %v2303
  %2336 = vst [vmem:[%s11 + $0x44] sm:$0xf] %v2304
  %2337 = vst [vmem:[%s11 + $0x48] sm:$0xf] %v2305
  %2338 = vst [vmem:[%s11 + $0x4c] sm:$0xf] %v2306
  %2339 = vst [vmem:[%s11 + $0x50] sm:$0xf] %v2307
  %2340 = vst [vmem:[%s11 + $0x54] sm:$0xf] %v2308
  %2341 = vst [vmem:[%s11 + $0x58] sm:$0xf] %v2309
  %2342 = vst [vmem:[%s11 + $0x5c] sm:$0xf] %v2310
  %2343 = vst [vmem:[%s11 + $0x60] sm:$0xf] %v2311
  %2344 = vst [vmem:[%s11 + $0x64] sm:$0xf] %v2312
  %2345 = vst [vmem:[%s11 + $0x68] sm:$0xf] %v2313
  %2346 = vst [vmem:[%s11 + $0x6c] sm:$0xf] %v2314
  %2347 = vst [vmem:[%s11 + $0x70] sm:$0xf] %v2315
  %2348 = vst [vmem:[%s11 + $0x74] sm:$0xf] %v2316
  %2349 = vst [vmem:[%s11 + $0x78] sm:$0xf] %v2317
  %2350 = vst [vmem:[%s11 + $0x7c] sm:$0xf] %v2318
  // Predicated region
  $region46: #{dense_decoder_forward.1} parent=0 // pred_check
    _
  $region47: #{dense_decoder_forward.1} parent=0 // pred_check_branch
    %2352 = sbr.rel (0) target = $region49
  $region48: #{dense_decoder_forward.1} parent=0 // pred_region
    _
  $region49: #{dense_decoder_forward.1} parent=0 // pred_fallthru
    _
  // Predicated region
  $region50: #{dense_decoder_forward.1} parent=0 // pred_check
    _
  $region51: #{dense_decoder_forward.1} parent=0 // pred_check_branch
    %2354 = sbr.rel (0) target = $region53
  $region52: #{dense_decoder_forward.1} parent=0 // pred_region
    _
  $region53: #{dense_decoder_forward.1} parent=0 // pred_fallthru
    _

</llo_original>
